<compile_context>
chip_gen: v5e
topology: v5e:2x2
jax: 0.10.0
libtpu: 0.0.40
codegen_flags: <defaults>
</compile_context>

<pallas_src>
import functools
import math

import jax
import jax.numpy as jnp
from jax.experimental import pallas as pl
from jax.experimental.pallas import tpu as pltpu

PAD = 2  # spatial padding of the rd conv

# (kh, kw) positions inside the 5x5 rd kernel, paired in the order the PyTorch
# code assigns them (outer[i] gets +w3[i+1], inner[i] gets -theta*w3[i+1]).
_OUTER = ((0, 0), (0, 2), (0, 4), (2, 0), (2, 4), (4, 0), (4, 2), (4, 4))
_INNER = ((1, 1), (1, 2), (1, 3), (2, 1), (2, 3), (3, 1), (3, 2), (3, 3))
_CENTER = (2, 2)


def build_rd_weight(weight3, theta):
    """Plain-JAX rd-weight construction (matches the PyTorch code verbatim)."""
    c_out, c_in = weight3.shape[:2]
    wf = weight3.reshape(c_out, c_in, 9)
    wrd = jnp.zeros((c_out, c_in, 25), weight3.dtype)
    wrd = wrd.at[:, :, jnp.array([0, 2, 4, 10, 14, 20, 22, 24])].set(wf[:, :, 1:])
    wrd = wrd.at[:, :, jnp.array([6, 7, 8, 11, 13, 16, 17, 18])].set(-wf[:, :, 1:] * theta)
    wrd = wrd.at[:, :, 12].set(wf[:, :, 0] * (1.0 - theta))
    return wrd.reshape(c_out, c_in, 5, 5)


def _conv_rd_kernel(x_ref, w_ref, o_ref, acc_ref, *,
                    ring_offsets, center_offset, theta, hflat, use_center):
    # x_ref  : (Cin_t, Lpad)          spatially padded, HW-flattened input slab
    # w_ref  : (n_taps, Cout_t, Cin_t) fused tap weights
    # o_ref  : (Cout_t, Hflat)        column h*Wp + w holds out[:, h, w]
    # acc_ref: (Cout_t, Hflat) f32    persists across the Cin grid axis
    ci = pl.program_id(2)

    @pl.when(ci == 0)
    def _init():
        acc_ref[...] = jnp.zeros_like(acc_ref)

    # 8 fused ring taps: one VPU subtract + one MXU dot covers both the outer
    # (+w) and inner (-theta*w) 5x5 taps.  Each slab is a static lane-offset
    # slice of the resident VMEM block (no im2col relayout copies).
    for t, (o_off, i_off) in enumerate(ring_offsets):
        d = (x_ref[:, o_off:o_off + hflat]
             - theta * x_ref[:, i_off:i_off + hflat])
        acc_ref[...] += jnp.dot(w_ref[t], d,
                                preferred_element_type=jnp.float32)

    # Center tap; (1 - theta) is folded into the packed weight.  Skipped
    # entirely (statically) when theta == 1, where it is exactly zero.
    if use_center:
        acc_ref[...] += jnp.dot(
            w_ref[len(ring_offsets)],
            x_ref[:, center_offset:center_offset + hflat],
            preferred_element_type=jnp.float32)

    @pl.when(ci == pl.num_programs(2) - 1)
    def _store():
        o_ref[...] = acc_ref[...].astype(o_ref.dtype)


def _channel_tile(c, limit, align):
    """Largest tile <= limit that divides c and is a multiple of `align`;
    falls back to the full dim (which Pallas block rules always accept)."""
    if c <= limit:
        return c
    t = (limit // align) * align
    while t >= align:
        if c % t == 0:
            return t
        t -= align
    return c


def conv2d_rd(x_nchw, weight3, theta=1.0, *, compute_dtype=None):
    """Forward of Conv2d_rd (stride=1, padding=2, dilation=1, groups=1, bias=False)."""
    # TODO(synk): the theta == 0 branch of the module (a plain 3x3 conv with
    # padding=2, which changes the output size) is not implemented here; the
    # module default theta=1.0 takes the rd path below.
    assert math.fabs(theta - 0.0) >= 1e-8, \
        "theta == 0 (plain 3x3 conv) branch not implemented"

    n, c_in, h, w = x_nchw.shape
    c_out, c_in_w = weight3.shape[:2]
    assert c_in_w == c_in

    wp = w + 2 * PAD                   # padded width
    hflat = h * wp                     # flattened output length (junk cols w>=W)
    lpad = (h + 2 * PAD + 1) * wp      # +1 extra zero row so every tap slice fits

    if compute_dtype is None:
        compute_dtype = x_nchw.dtype   # keep f32 (module fidelity); bf16 optional

    # ---- pack the fused tap weights: (n_taps, Cout, Cin) --------------------
    w3f = weight3.reshape(c_out, c_in, 9)
    use_center = math.fabs(1.0 - theta) >= 1e-8
    taps = [w3f[:, :, i + 1] for i in range(8)]
    if use_center:
        taps.append(w3f[:, :, 0] * (1.0 - theta))
    w_pack = jnp.stack(taps, axis=0).astype(compute_dtype)
    n_taps = w_pack.shape[0]

    # ---- pad + flatten the activation (stays NCHW-ordered: no transposes) ---
    xp = jnp.pad(x_nchw, ((0, 0), (0, 0), (PAD, PAD + 1), (PAD, PAD)))
    xf = xp.reshape(n, c_in, lpad).astype(compute_dtype)

    # flat lane offsets of the fused taps
    ring_offsets = tuple((oh * wp + ow, ih * wp + iw)
                         for (oh, ow), (ih, iw) in zip(_OUTER, _INNER))
    center_offset = _CENTER[0] * wp + _CENTER[1]

    # ---- channel tiling ------------------------------------------------------
    tci = _channel_tile(c_in, limit=128, align=128)   # minor dim of weight block
    tco = _channel_tile(c_out, limit=128, align=8)
    grid = (n, c_out // tco, c_in // tci)

    kernel = functools.partial(
        _conv_rd_kernel,
        ring_offsets=ring_offsets, center_offset=center_offset,
        theta=float(theta), hflat=hflat, use_center=use_center)

    out_flat = pl.pallas_call(
        kernel,
        out_shape=jax.ShapeDtypeStruct((n, c_out, hflat), x_nchw.dtype),
        grid=grid,
        in_specs=[
            pl.BlockSpec((None, tci, lpad), lambda b, co, ci: (b, ci, 0)),
            pl.BlockSpec((n_taps, tco, tci), lambda b, co, ci: (0, co, ci)),
        ],
        out_specs=pl.BlockSpec((None, tco, hflat), lambda b, co, ci: (b, co, 0)),
        scratch_shapes=[pltpu.VMEM((tco, hflat), jnp.float32)],
        compiler_params=pltpu.CompilerParams(
            dimension_semantics=("parallel", "parallel", "arbitrary")),
    )(xf, w_pack)

    # Output comes back already channel-major; drop the junk padded-width cols.
    return out_flat.reshape(n, c_out, h, wp)[:, :, :, :w]


if __name__ == "__main__":
    key = jax.random.PRNGKey(0)
    k_x, k_w, k_x2, k_w2 = jax.random.split(key, 4)

    # Primary shape: batch=2, Cin=4, Cout=8, 16x16 spatial, theta=1.0 (default).
    n, c_in, c_out, h, w = 2, 4, 8, 16, 16
    fan_in = c_in * 3 * 3
    bound = 1.0 / math.sqrt(fan_in)
    x = jax.random.normal(k_x, (n, c_in, h, w), dtype=jnp.float32)
    w3 = jax.random.uniform(k_w, (c_out, c_in, 3, 3),
                            minval=-bound, maxval=bound, dtype=jnp.float32)

    out = conv2d_rd(x, w3, theta=1.0)
    jax.block_until_ready(out)
    assert out.shape == (n, c_out, h, w)

    ref = jax.lax.conv_general_dilated(
        x, build_rd_weight(w3, 1.0), window_strides=(1, 1),
        padding=((PAD, PAD), (PAD, PAD)),
        dimension_numbers=("NCHW", "OIHW", "NCHW"))
    assert jnp.allclose(out, ref, atol=1e-4, rtol=1e-4), \
        float(jnp.max(jnp.abs(out - ref)))

    # Secondary shape: exercises the center tap (theta != 1) and odd sizes.
    n2, c_in2, c_out2, h2, w2, theta2 = 1, 3, 6, 12, 10, 0.5
    x2 = jax.random.normal(k_x2, (n2, c_in2, h2, w2), dtype=jnp.float32)
    w32 = jax.random.uniform(k_w2, (c_out2, c_in2, 3, 3),
                             minval=-0.3, maxval=0.3, dtype=jnp.float32)
    out2 = conv2d_rd(x2, w32, theta=theta2)
    jax.block_until_ready(out2)

    ref2 = jax.lax.conv_general_dilated(
        x2, build_rd_weight(w32, theta2), window_strides=(1, 1),
        padding=((PAD, PAD), (PAD, PAD)),
        dimension_numbers=("NCHW", "OIHW", "NCHW"))
    assert out2.shape == (n2, c_out2, h2, w2)
    assert jnp.allclose(out2, ref2, atol=1e-4, rtol=1e-4), \
        float(jnp.max(jnp.abs(out2 - ref2)))

    print("KERNEL_OK")
</pallas_src>

<mosaic_0001>
module attributes {stable_mosaic.version = 11 : i64} {
  func.func @_conv_rd_kernel(%arg0: i32, %arg1: i32, %arg2: i32, %arg3: memref<1x4x420xf32, #tpu.memory_space<vmem>>, %arg4: memref<8x8x4xf32, #tpu.memory_space<vmem>>, %arg5: memref<1x8x320xf32, #tpu.memory_space<vmem>>, %arg6: memref<8x320xf32, #tpu.memory_space<vmem>>) attributes {dimension_semantics = [#tpu.dimension_semantics<parallel>, #tpu.dimension_semantics<parallel>, #tpu.dimension_semantics<arbitrary>], iteration_bounds = array<i64: 2, 1, 1>, scalar_prefetch = 0 : i64, scratch_operands = 1 : i64, tpu.core_type = #tpu.core_type<tc>, window_params = [{transform_indices = @transform_0, window_bounds = array<i64: 1, 4, 420>}, {transform_indices = @transform_1, window_bounds = array<i64: 8, 8, 4>}, {transform_indices = @transform_2, window_bounds = array<i64: 1, 8, 320>}]} {
    %c0_i32 = arith.constant 0 : i32
    %0 = arith.cmpi eq, %arg2, %c0_i32 : i32
    %1 = arith.extui %0 : i1 to i32
    %c0_i32_0 = arith.constant 0 : i32
    %2 = arith.cmpi ne, %1, %c0_i32_0 : i32
    scf.if %2 {
      %cst_101 = arith.constant 0.000000e+00 : f32
      %110 = vector.broadcast %cst_101 : f32 to vector<8x320xf32>
      %c0_102 = arith.constant 0 : index
      %c0_103 = arith.constant 0 : index
      %111 = vector.load %arg6[%c0_102, %c0_103] : memref<8x320xf32, #tpu.memory_space<vmem>>, vector<8x320xf32>
      tpu.vector_store %arg6[%c0_102, %c0_103], %110 {strides = array<i32>} : memref<8x320xf32, #tpu.memory_space<vmem>>, vector<8x320xf32>,
    } else {
    }
    %c0 = arith.constant 0 : index
    %c0_1 = arith.constant 0 : index
    %c0_2 = arith.constant 0 : index
    %3 = vector.load %arg3[%c0, %c0_1, %c0_2] : memref<1x4x420xf32, #tpu.memory_space<vmem>>, vector<1x4x320xf32>
    %4 = vector.shape_cast %3 : vector<1x4x320xf32> to vector<4x320xf32>
    %c0_3 = arith.constant 0 : index
    %c0_4 = arith.constant 0 : index
    %c21 = arith.constant 21 : index
    %5 = vector.load %arg3[%c0_3, %c0_4, %c21] : memref<1x4x420xf32, #tpu.memory_space<vmem>>, vector<1x4x320xf32>
    %6 = vector.shape_cast %5 : vector<1x4x320xf32> to vector<4x320xf32>
    %cst = arith.constant 1.000000e+00 : f32
    %7 = vector.broadcast %cst : f32 to vector<4x320xf32>
    %8 = arith.mulf %7, %6 : vector<4x320xf32>
    %9 = arith.subf %4, %8 : vector<4x320xf32>
    %c0_5 = arith.constant 0 : index
    %c0_6 = arith.constant 0 : index
    %10 = vector.load %arg6[%c0_5, %c0_6] : memref<8x320xf32, #tpu.memory_space<vmem>>, vector<8x320xf32>
    %c0_7 = arith.constant 0 : index
    %c0_8 = arith.constant 0 : index
    %c0_9 = arith.constant 0 : index
    %11 = vector.load %arg4[%c0_7, %c0_8, %c0_9] : memref<8x8x4xf32, #tpu.memory_space<vmem>>, vector<1x8x4xf32>
    %12 = vector.shape_cast %11 : vector<1x8x4xf32> to vector<8x4xf32>
    %cst_10 = arith.constant dense<0.000000e+00> : vector<8x320xf32>
    %13 = tpu.matmul %12, %9, %cst_10 {dimension_numbers = #tpu.dot_dimension_numbers<[1], [0], [0], [1], [0, 0, 1, 1], [], []>} : vector<8x4xf32>, vector<4x320xf32>, vector<8x320xf32> -> vector<8x320xf32>
    %14 = arith.addf %10, %13 : vector<8x320xf32>
    %c0_11 = arith.constant 0 : index
    %c0_12 = arith.constant 0 : index
    %15 = vector.load %arg6[%c0_11, %c0_12] : memref<8x320xf32, #tpu.memory_space<vmem>>, vector<8x320xf32>
    tpu.vector_store %arg6[%c0_11, %c0_12], %14 {strides = array<i32>} : memref<8x320xf32, #tpu.memory_space<vmem>>, vector<8x320xf32>,
    %c0_13 = arith.constant 0 : index
    %c0_14 = arith.constant 0 : index
    %c2 = arith.constant 2 : index
    %16 = vector.load %arg3[%c0_13, %c0_14, %c2] : memref<1x4x420xf32, #tpu.memory_space<vmem>>, vector<1x4x320xf32>
    %17 = vector.shape_cast %16 : vector<1x4x320xf32> to vector<4x320xf32>
    %c0_15 = arith.constant 0 : index
    %c0_16 = arith.constant 0 : index
    %c22 = arith.constant 22 : index
    %18 = vector.load %arg3[%c0_15, %c0_16, %c22] : memref<1x4x420xf32, #tpu.memory_space<vmem>>, vector<1x4x320xf32>
    %19 = vector.shape_cast %18 : vector<1x4x320xf32> to vector<4x320xf32>
    %cst_17 = arith.constant 1.000000e+00 : f32
    %20 = vector.broadcast %cst_17 : f32 to vector<4x320xf32>
    %21 = arith.mulf %20, %19 : vector<4x320xf32>
    %22 = arith.subf %17, %21 : vector<4x320xf32>
    %c0_18 = arith.constant 0 : index
    %c0_19 = arith.constant 0 : index
    %23 = vector.load %arg6[%c0_18, %c0_19] : memref<8x320xf32, #tpu.memory_space<vmem>>, vector<8x320xf32>
    %c1 = arith.constant 1 : index
    %c0_20 = arith.constant 0 : index
    %c0_21 = arith.constant 0 : index
    %24 = vector.load %arg4[%c1, %c0_20, %c0_21] : memref<8x8x4xf32, #tpu.memory_space<vmem>>, vector<1x8x4xf32>
    %25 = vector.shape_cast %24 : vector<1x8x4xf32> to vector<8x4xf32>
    %cst_22 = arith.constant dense<0.000000e+00> : vector<8x320xf32>
    %26 = tpu.matmul %25, %22, %cst_22 {dimension_numbers = #tpu.dot_dimension_numbers<[1], [0], [0], [1], [0, 0, 1, 1], [], []>} : vector<8x4xf32>, vector<4x320xf32>, vector<8x320xf32> -> vector<8x320xf32>
    %27 = arith.addf %23, %26 : vector<8x320xf32>
    %c0_23 = arith.constant 0 : index
    %c0_24 = arith.constant 0 : index
    %28 = vector.load %arg6[%c0_23, %c0_24] : memref<8x320xf32, #tpu.memory_space<vmem>>, vector<8x320xf32>
    tpu.vector_store %arg6[%c0_23, %c0_24], %27 {strides = array<i32>} : memref<8x320xf32, #tpu.memory_space<vmem>>, vector<8x320xf32>,
    %c0_25 = arith.constant 0 : index
    %c0_26 = arith.constant 0 : index
    %c4 = arith.constant 4 : index
    %29 = vector.load %arg3[%c0_25, %c0_26, %c4] : memref<1x4x420xf32, #tpu.memory_space<vmem>>, vector<1x4x320xf32>
    %30 = vector.shape_cast %29 : vector<1x4x320xf32> to vector<4x320xf32>
    %c0_27 = arith.constant 0 : index
    %c0_28 = arith.constant 0 : index
    %c23 = arith.constant 23 : index
    %31 = vector.load %arg3[%c0_27, %c0_28, %c23] : memref<1x4x420xf32, #tpu.memory_space<vmem>>, vector<1x4x320xf32>
    %32 = vector.shape_cast %31 : vector<1x4x320xf32> to vector<4x320xf32>
    %cst_29 = arith.constant 1.000000e+00 : f32
    %33 = vector.broadcast %cst_29 : f32 to vector<4x320xf32>
    %34 = arith.mulf %33, %32 : vector<4x320xf32>
    %35 = arith.subf %30, %34 : vector<4x320xf32>
    %c0_30 = arith.constant 0 : index
    %c0_31 = arith.constant 0 : index
    %36 = vector.load %arg6[%c0_30, %c0_31] : memref<8x320xf32, #tpu.memory_space<vmem>>, vector<8x320xf32>
    %c2_32 = arith.constant 2 : index
    %c0_33 = arith.constant 0 : index
    %c0_34 = arith.constant 0 : index
    %37 = vector.load %arg4[%c2_32, %c0_33, %c0_34] : memref<8x8x4xf32, #tpu.memory_space<vmem>>, vector<1x8x4xf32>
    %38 = vector.shape_cast %37 : vector<1x8x4xf32> to vector<8x4xf32>
    %cst_35 = arith.constant dense<0.000000e+00> : vector<8x320xf32>
    %39 = tpu.matmul %38, %35, %cst_35 {dimension_numbers = #tpu.dot_dimension_numbers<[1], [0], [0], [1], [0, 0, 1, 1], [], []>} : vector<8x4xf32>, vector<4x320xf32>, vector<8x320xf32> -> vector<8x320xf32>
    %40 = arith.addf %36, %39 : vector<8x320xf32>
    %c0_36 = arith.constant 0 : index
    %c0_37 = arith.constant 0 : index
    %41 = vector.load %arg6[%c0_36, %c0_37] : memref<8x320xf32, #tpu.memory_space<vmem>>, vector<8x320xf32>
    tpu.vector_store %arg6[%c0_36, %c0_37], %40 {strides = array<i32>} : memref<8x320xf32, #tpu.memory_space<vmem>>, vector<8x320xf32>,
    %c0_38 = arith.constant 0 : index
    %c0_39 = arith.constant 0 : index
    %c40 = arith.constant 40 : index
    %42 = vector.load %arg3[%c0_38, %c0_39, %c40] : memref<1x4x420xf32, #tpu.memory_space<vmem>>, vector<1x4x320xf32>
    %43 = vector.shape_cast %42 : vector<1x4x320xf32> to vector<4x320xf32>
    %c0_40 = arith.constant 0 : index
    %c0_41 = arith.constant 0 : index
    %c41 = arith.constant 41 : index
    %44 = vector.load %arg3[%c0_40, %c0_41, %c41] : memref<1x4x420xf32, #tpu.memory_space<vmem>>, vector<1x4x320xf32>
    %45 = vector.shape_cast %44 : vector<1x4x320xf32> to vector<4x320xf32>
    %cst_42 = arith.constant 1.000000e+00 : f32
    %46 = vector.broadcast %cst_42 : f32 to vector<4x320xf32>
    %47 = arith.mulf %46, %45 : vector<4x320xf32>
    %48 = arith.subf %43, %47 : vector<4x320xf32>
    %c0_43 = arith.constant 0 : index
    %c0_44 = arith.constant 0 : index
    %49 = vector.load %arg6[%c0_43, %c0_44] : memref<8x320xf32, #tpu.memory_space<vmem>>, vector<8x320xf32>
    %c3 = arith.constant 3 : index
    %c0_45 = arith.constant 0 : index
    %c0_46 = arith.constant 0 : index
    %50 = vector.load %arg4[%c3, %c0_45, %c0_46] : memref<8x8x4xf32, #tpu.memory_space<vmem>>, vector<1x8x4xf32>
    %51 = vector.shape_cast %50 : vector<1x8x4xf32> to vector<8x4xf32>
    %cst_47 = arith.constant dense<0.000000e+00> : vector<8x320xf32>
    %52 = tpu.matmul %51, %48, %cst_47 {dimension_numbers = #tpu.dot_dimension_numbers<[1], [0], [0], [1], [0, 0, 1, 1], [], []>} : vector<8x4xf32>, vector<4x320xf32>, vector<8x320xf32> -> vector<8x320xf32>
    %53 = arith.addf %49, %52 : vector<8x320xf32>
    %c0_48 = arith.constant 0 : index
    %c0_49 = arith.constant 0 : index
    %54 = vector.load %arg6[%c0_48, %c0_49] : memref<8x320xf32, #tpu.memory_space<vmem>>, vector<8x320xf32>
    tpu.vector_store %arg6[%c0_48, %c0_49], %53 {strides = array<i32>} : memref<8x320xf32, #tpu.memory_space<vmem>>, vector<8x320xf32>,
    %c0_50 = arith.constant 0 : index
    %c0_51 = arith.constant 0 : index
    %c44 = arith.constant 44 : index
    %55 = vector.load %arg3[%c0_50, %c0_51, %c44] : memref<1x4x420xf32, #tpu.memory_space<vmem>>, vector<1x4x320xf32>
    %56 = vector.shape_cast %55 : vector<1x4x320xf32> to vector<4x320xf32>
    %c0_52 = arith.constant 0 : index
    %c0_53 = arith.constant 0 : index
    %c43 = arith.constant 43 : index
    %57 = vector.load %arg3[%c0_52, %c0_53, %c43] : memref<1x4x420xf32, #tpu.memory_space<vmem>>, vector<1x4x320xf32>
    %58 = vector.shape_cast %57 : vector<1x4x320xf32> to vector<4x320xf32>
    %cst_54 = arith.constant 1.000000e+00 : f32
    %59 = vector.broadcast %cst_54 : f32 to vector<4x320xf32>
    %60 = arith.mulf %59, %58 : vector<4x320xf32>
    %61 = arith.subf %56, %60 : vector<4x320xf32>
    %c0_55 = arith.constant 0 : index
    %c0_56 = arith.constant 0 : index
    %62 = vector.load %arg6[%c0_55, %c0_56] : memref<8x320xf32, #tpu.memory_space<vmem>>, vector<8x320xf32>
    %c4_57 = arith.constant 4 : index
    %c0_58 = arith.constant 0 : index
    %c0_59 = arith.constant 0 : index
    %63 = vector.load %arg4[%c4_57, %c0_58, %c0_59] : memref<8x8x4xf32, #tpu.memory_space<vmem>>, vector<1x8x4xf32>
    %64 = vector.shape_cast %63 : vector<1x8x4xf32> to vector<8x4xf32>
    %cst_60 = arith.constant dense<0.000000e+00> : vector<8x320xf32>
    %65 = tpu.matmul %64, %61, %cst_60 {dimension_numbers = #tpu.dot_dimension_numbers<[1], [0], [0], [1], [0, 0, 1, 1], [], []>} : vector<8x4xf32>, vector<4x320xf32>, vector<8x320xf32> -> vector<8x320xf32>
    %66 = arith.addf %62, %65 : vector<8x320xf32>
    %c0_61 = arith.constant 0 : index
    %c0_62 = arith.constant 0 : index
    %67 = vector.load %arg6[%c0_61, %c0_62] : memref<8x320xf32, #tpu.memory_space<vmem>>, vector<8x320xf32>
    tpu.vector_store %arg6[%c0_61, %c0_62], %66 {strides = array<i32>} : memref<8x320xf32, #tpu.memory_space<vmem>>, vector<8x320xf32>,
    %c0_63 = arith.constant 0 : index
    %c0_64 = arith.constant 0 : index
    %c80 = arith.constant 80 : index
    %68 = vector.load %arg3[%c0_63, %c0_64, %c80] : memref<1x4x420xf32, #tpu.memory_space<vmem>>, vector<1x4x320xf32>
    %69 = vector.shape_cast %68 : vector<1x4x320xf32> to vector<4x320xf32>
    %c0_65 = arith.constant 0 : index
    %c0_66 = arith.constant 0 : index
    %c61 = arith.constant 61 : index
    %70 = vector.load %arg3[%c0_65, %c0_66, %c61] : memref<1x4x420xf32, #tpu.memory_space<vmem>>, vector<1x4x320xf32>
    %71 = vector.shape_cast %70 : vector<1x4x320xf32> to vector<4x320xf32>
    %cst_67 = arith.constant 1.000000e+00 : f32
    %72 = vector.broadcast %cst_67 : f32 to vector<4x320xf32>
    %73 = arith.mulf %72, %71 : vector<4x320xf32>
    %74 = arith.subf %69, %73 : vector<4x320xf32>
    %c0_68 = arith.constant 0 : index
    %c0_69 = arith.constant 0 : index
    %75 = vector.load %arg6[%c0_68, %c0_69] : memref<8x320xf32, #tpu.memory_space<vmem>>, vector<8x320xf32>
    %c5 = arith.constant 5 : index
    %c0_70 = arith.constant 0 : index
    %c0_71 = arith.constant 0 : index
    %76 = vector.load %arg4[%c5, %c0_70, %c0_71] : memref<8x8x4xf32, #tpu.memory_space<vmem>>, vector<1x8x4xf32>
    %77 = vector.shape_cast %76 : vector<1x8x4xf32> to vector<8x4xf32>
    %cst_72 = arith.constant dense<0.000000e+00> : vector<8x320xf32>
    %78 = tpu.matmul %77, %74, %cst_72 {dimension_numbers = #tpu.dot_dimension_numbers<[1], [0], [0], [1], [0, 0, 1, 1], [], []>} : vector<8x4xf32>, vector<4x320xf32>, vector<8x320xf32> -> vector<8x320xf32>
    %79 = arith.addf %75, %78 : vector<8x320xf32>
    %c0_73 = arith.constant 0 : index
    %c0_74 = arith.constant 0 : index
    %80 = vector.load %arg6[%c0_73, %c0_74] : memref<8x320xf32, #tpu.memory_space<vmem>>, vector<8x320xf32>
    tpu.vector_store %arg6[%c0_73, %c0_74], %79 {strides = array<i32>} : memref<8x320xf32, #tpu.memory_space<vmem>>, vector<8x320xf32>,
    %c0_75 = arith.constant 0 : index
    %c0_76 = arith.constant 0 : index
    %c82 = arith.constant 82 : index
    %81 = vector.load %arg3[%c0_75, %c0_76, %c82] : memref<1x4x420xf32, #tpu.memory_space<vmem>>, vector<1x4x320xf32>
    %82 = vector.shape_cast %81 : vector<1x4x320xf32> to vector<4x320xf32>
    %c0_77 = arith.constant 0 : index
    %c0_78 = arith.constant 0 : index
    %c62 = arith.constant 62 : index
    %83 = vector.load %arg3[%c0_77, %c0_78, %c62] : memref<1x4x420xf32, #tpu.memory_space<vmem>>, vector<1x4x320xf32>
    %84 = vector.shape_cast %83 : vector<1x4x320xf32> to vector<4x320xf32>
    %cst_79 = arith.constant 1.000000e+00 : f32
    %85 = vector.broadcast %cst_79 : f32 to vector<4x320xf32>
    %86 = arith.mulf %85, %84 : vector<4x320xf32>
    %87 = arith.subf %82, %86 : vector<4x320xf32>
    %c0_80 = arith.constant 0 : index
    %c0_81 = arith.constant 0 : index
    %88 = vector.load %arg6[%c0_80, %c0_81] : memref<8x320xf32, #tpu.memory_space<vmem>>, vector<8x320xf32>
    %c6 = arith.constant 6 : index
    %c0_82 = arith.constant 0 : index
    %c0_83 = arith.constant 0 : index
    %89 = vector.load %arg4[%c6, %c0_82, %c0_83] : memref<8x8x4xf32, #tpu.memory_space<vmem>>, vector<1x8x4xf32>
    %90 = vector.shape_cast %89 : vector<1x8x4xf32> to vector<8x4xf32>
    %cst_84 = arith.constant dense<0.000000e+00> : vector<8x320xf32>
    %91 = tpu.matmul %90, %87, %cst_84 {dimension_numbers = #tpu.dot_dimension_numbers<[1], [0], [0], [1], [0, 0, 1, 1], [], []>} : vector<8x4xf32>, vector<4x320xf32>, vector<8x320xf32> -> vector<8x320xf32>
    %92 = arith.addf %88, %91 : vector<8x320xf32>
    %c0_85 = arith.constant 0 : index
    %c0_86 = arith.constant 0 : index
    %93 = vector.load %arg6[%c0_85, %c0_86] : memref<8x320xf32, #tpu.memory_space<vmem>>, vector<8x320xf32>
    tpu.vector_store %arg6[%c0_85, %c0_86], %92 {strides = array<i32>} : memref<8x320xf32, #tpu.memory_space<vmem>>, vector<8x320xf32>,
    %c0_87 = arith.constant 0 : index
    %c0_88 = arith.constant 0 : index
    %c84 = arith.constant 84 : index
    %94 = vector.load %arg3[%c0_87, %c0_88, %c84] : memref<1x4x420xf32, #tpu.memory_space<vmem>>, vector<1x4x320xf32>
    %95 = vector.shape_cast %94 : vector<1x4x320xf32> to vector<4x320xf32>
    %c0_89 = arith.constant 0 : index
    %c0_90 = arith.constant 0 : index
    %c63 = arith.constant 63 : index
    %96 = vector.load %arg3[%c0_89, %c0_90, %c63] : memref<1x4x420xf32, #tpu.memory_space<vmem>>, vector<1x4x320xf32>
    %97 = vector.shape_cast %96 : vector<1x4x320xf32> to vector<4x320xf32>
    %cst_91 = arith.constant 1.000000e+00 : f32
    %98 = vector.broadcast %cst_91 : f32 to vector<4x320xf32>
    %99 = arith.mulf %98, %97 : vector<4x320xf32>
    %100 = arith.subf %95, %99 : vector<4x320xf32>
    %c0_92 = arith.constant 0 : index
    %c0_93 = arith.constant 0 : index
    %101 = vector.load %arg6[%c0_92, %c0_93] : memref<8x320xf32, #tpu.memory_space<vmem>>, vector<8x320xf32>
    %c7 = arith.constant 7 : index
    %c0_94 = arith.constant 0 : index
    %c0_95 = arith.constant 0 : index
    %102 = vector.load %arg4[%c7, %c0_94, %c0_95] : memref<8x8x4xf32, #tpu.memory_space<vmem>>, vector<1x8x4xf32>
    %103 = vector.shape_cast %102 : vector<1x8x4xf32> to vector<8x4xf32>
    %cst_96 = arith.constant dense<0.000000e+00> : vector<8x320xf32>
    %104 = tpu.matmul %103, %100, %cst_96 {dimension_numbers = #tpu.dot_dimension_numbers<[1], [0], [0], [1], [0, 0, 1, 1], [], []>} : vector<8x4xf32>, vector<4x320xf32>, vector<8x320xf32> -> vector<8x320xf32>
    %105 = arith.addf %101, %104 : vector<8x320xf32>
    %c0_97 = arith.constant 0 : index
    %c0_98 = arith.constant 0 : index
    %106 = vector.load %arg6[%c0_97, %c0_98] : memref<8x320xf32, #tpu.memory_space<vmem>>, vector<8x320xf32>
    tpu.vector_store %arg6[%c0_97, %c0_98], %105 {strides = array<i32>} : memref<8x320xf32, #tpu.memory_space<vmem>>, vector<8x320xf32>,
    %c0_i32_99 = arith.constant 0 : i32
    %107 = arith.cmpi eq, %arg2, %c0_i32_99 : i32
    %108 = arith.extui %107 : i1 to i32
    %c0_i32_100 = arith.constant 0 : i32
    %109 = arith.cmpi ne, %108, %c0_i32_100 : i32
    scf.if %109 {
      %c0_101 = arith.constant 0 : index
      %c0_102 = arith.constant 0 : index
      %110 = vector.load %arg6[%c0_101, %c0_102] : memref<8x320xf32, #tpu.memory_space<vmem>>, vector<8x320xf32>
      %c0_103 = arith.constant 0 : index
      %c0_104 = arith.constant 0 : index
      %c0_105 = arith.constant 0 : index
      %111 = vector.load %arg5[%c0_103, %c0_104, %c0_105] : memref<1x8x320xf32, #tpu.memory_space<vmem>>, vector<1x8x320xf32>
      %112 = vector.shape_cast %111 : vector<1x8x320xf32> to vector<8x320xf32>
      %113 = vector.shape_cast %110 : vector<8x320xf32> to vector<1x8x320xf32>
      tpu.vector_store %arg5[%c0_103, %c0_104, %c0_105], %113 {strides = array<i32>} : memref<1x8x320xf32, #tpu.memory_space<vmem>>, vector<1x8x320xf32>,
    } else {
    }
    return
  }
  func.func @transform_0(%arg0: i32, %arg1: i32, %arg2: i32) -> (i32, i32, i32) {
    %c0_i32 = arith.constant 0 : i32
    %c0_i32_0 = arith.constant 0 : i32
    return %arg0, %arg2, %c0_i32 : i32, i32, i32
  }
  func.func @transform_1(%arg0: i32, %arg1: i32, %arg2: i32) -> (i32, i32, i32) {
    %c0_i32 = arith.constant 0 : i32
    %c0_i32_0 = arith.constant 0 : i32
    return %c0_i32, %arg1, %arg2 : i32, i32, i32
  }
  func.func @transform_2(%arg0: i32, %arg1: i32, %arg2: i32) -> (i32, i32, i32) {
    %c0_i32 = arith.constant 0 : i32
    %c0_i32_0 = arith.constant 0 : i32
    return %arg0, %arg1, %c0_i32 : i32, i32, i32
  }
}

</mosaic_0001>

<llo_original>
// kernel: tpu_custom_call.1
$region0: #{tpu_custom_call.1}
  #allocation0 [shape = 'u32[]', space=smem, size = 0x4, offset = 0x4, fixed_abs, tag = 'smem constant byte address 0x4 - core index']
  #allocation1 [shape = 'u32[72,128]{1,0:T(1,128)}', space=vmem, size = 0x9000, scoped, tag = 'internal scratch']
  #allocation2 [shape = 'f32[8,320]{1,0:T(8,128)}', space=vmem, size = 0x3000, scoped, tag = 'scratch operand']
  %s0 = inlined_call_operand.vmem [shape: f32[2,4,420], index: 0, kind: input, shape index: {}]
  %s1 = inlined_call_operand.vmem [shape: f32[8,8,4], index: 1, kind: input, shape index: {}]
  %s2 = inlined_call_operand.hbm [shape: f32[2,8,320], index: 2, kind: output, shape index: {}]
  %s3 = sld [smem:[#allocation0]]
  $region49: #{tpu_custom_call.1} parent=0
    _
  %s5 = ssub.s32 1, %s3
  %s6 = scalar_select 0, %s5, %s3
  $region1: #{tpu_custom_call.1} parent=0
    #allocation3 [shape = 'u8[24576]{0}', space=vmem, size = 0x6000, scoped, tag = 'output window, operand 0']
    #allocation4 [shape = 's32[2]{0}', space=sflag, size = 0x8, scoped, tag = 'scoped memory for tpu_custom_call.1']
    %7 = vsyncpa [#allocation4], 0
    %s8 = scalar_lea.sflag [#allocation4], 1
    %9 = vsyncpa %s8, 0
    loop: start=0, step=1, limit=4
    $region2: #{tpu_custom_call.1} parent=1 // loop_pre_header
      _
    $region3: #{tpu_custom_call.1} parent=1 // loop_header
      %s11 = sphi 0, %s15
      %p12 = scmp.ge.s32.totalorder %s11, 4
      %s18 = sphi 0, %s37
      %s19 = sphi 0, %s33
      %s20 = sphi 0, %s29
      %s21 = sphi 0, %s18
      %s22 = sphi 0, %s19
      %s23 = sphi 0, %s20
      %s24 = sphi 0, %s21
      %s25 = sphi 0, %s22
      %s26 = sphi 0, %s23
      %s42 = sphi 0, %s44
      %s45 = sphi 0, %s42
      %s46 = sphi 0, %s45
      %s62 = sphi 0, %s46
      %s70 = sphi 0, %s72
      %s73 = sphi 0, %s70
      %s74 = sphi 0, %s73
      %s90 = sphi 0, %s74
      %s98 = sphi 0, %s100
      %s101 = sphi 0, %s98
      %s102 = sphi 0, %s101
      %s118 = sphi 0, %s102
    $region4: #{tpu_custom_call.1} parent=1 // loop_header_branch
      %14 = sbr.rel (%p12) target = $region8
    $region5: #{tpu_custom_call.1} parent=1 // loop_body
      %s16 = ssub.s32 %s11, 1
      %s17 = ssub.s32 %s11, 2
      %s27 = sadd.s32 1, %s20
      %p28 = scmp.ge.s32.totalorder %s27, 1
      %s29 = scalar_select %p28, 0, %s27
      %s30 = sadd.s32 1, %s19
      %s31 = scalar_select %p28, %s30, %s19
      %p32 = scmp.ge.s32.totalorder %s31, 1
      %s33 = scalar_select %p32, 0, %s31
      %s34 = sadd.s32 1, %s18
      %s35 = scalar_select %p32, %s34, %s18
      %p36 = scmp.ge.s32.totalorder %s35, 2
      %s37 = scalar_select %p36, 0, %s35
      %s38 = ssub.s32 %s18, %s37
      %s39 = ssub.s32 %s20, %s29
      %s40 = sor.u32 %s38, %s39
      %p41 = scmp.eq.s32.totalorder %s40, 0
      %s43 = sadd.s32 %s42, 1
      %s44 = scalar_select %p41, %s42, %s43
      %p47 = pneg %p41
      %p48 = scmp.eq.s32.totalorder %s11, 1
      %p49 = por %p47, %p48
      %p50 = scmp.ne.s32.totalorder %s42, %s45
      %p51 = scmp.eq.s32.totalorder %s11, 0
      %p52 = por %p50, %p51
      %p53 = scmp.ne.s32.totalorder %s42, %s45
      %p54 = scmp.eq.s32.totalorder %s16, 1
      %p55 = por %p53, %p54
      %p56 = scmp.ne.s32.totalorder %s45, %s46
      %p57 = scmp.eq.s32.totalorder %s16, 0
      %p58 = por %p56, %p57
      %p59 = scmp.ne.s32.totalorder %s45, %s46
      %p60 = scmp.eq.s32.totalorder %s17, 1
      %p61 = por %p59, %p60
      %p63 = scmp.ne.s32.totalorder %s46, %s62
      %p64 = scmp.eq.s32.totalorder %s17, 0
      %p65 = por %p63, %p64
      %s66 = ssub.s32 %s19, %s33
      %s67 = ssub.s32 %s20, %s29
      %s68 = sor.u32 %s66, %s67
      %p69 = scmp.eq.s32.totalorder %s68, 0
      %s71 = sadd.s32 %s70, 1
      %s72 = scalar_select %p69, %s70, %s71
      %p75 = pneg %p69
      %p76 = scmp.eq.s32.totalorder %s11, 1
      %p77 = por %p75, %p76
      %p78 = scmp.ne.s32.totalorder %s70, %s73
      %p79 = scmp.eq.s32.totalorder %s11, 0
      %p80 = por %p78, %p79
      %p81 = scmp.ne.s32.totalorder %s70, %s73
      %p82 = scmp.eq.s32.totalorder %s16, 1
      %p83 = por %p81, %p82
      %p84 = scmp.ne.s32.totalorder %s73, %s74
      %p85 = scmp.eq.s32.totalorder %s16, 0
      %p86 = por %p84, %p85
      %p87 = scmp.ne.s32.totalorder %s73, %s74
      %p88 = scmp.eq.s32.totalorder %s17, 1
      %p89 = por %p87, %p88
      %p91 = scmp.ne.s32.totalorder %s74, %s90
      %p92 = scmp.eq.s32.totalorder %s17, 0
      %p93 = por %p91, %p92
      %s94 = ssub.s32 %s18, %s37
      %s95 = ssub.s32 %s19, %s33
      %s96 = sor.u32 %s94, %s95
      %p97 = scmp.eq.s32.totalorder %s96, 0
      %s99 = sadd.s32 %s98, 1
      %s100 = scalar_select %p97, %s98, %s99
      %p103 = pneg %p97
      %p104 = scmp.eq.s32.totalorder %s11, 1
      %p105 = por %p103, %p104
      %p106 = scmp.ne.s32.totalorder %s98, %s101
      %p107 = scmp.eq.s32.totalorder %s11, 0
      %p108 = por %p106, %p107
      %p109 = scmp.ne.s32.totalorder %s98, %s101
      %p110 = scmp.eq.s32.totalorder %s16, 1
      %p111 = por %p109, %p110
      %p112 = scmp.ne.s32.totalorder %s101, %s102
      %p113 = scmp.eq.s32.totalorder %s16, 0
      %p114 = por %p112, %p113
      %p115 = scmp.ne.s32.totalorder %s101, %s102
      %p116 = scmp.eq.s32.totalorder %s17, 1
      %p117 = por %p115, %p116
      %p119 = scmp.ne.s32.totalorder %s102, %s118
      %p120 = scmp.eq.s32.totalorder %s17, 0
      %p121 = por %p119, %p120
      %p122 = scmp.le.s32.totalorder 1, %s11
      %p123 = scmp.lt.s32.totalorder %s11, 3
      %p124 = pnand %p122, %p123
      %p125 = pneg %p124
      // Predicated region
      $region9: #{tpu_custom_call.1} parent=5 // pred_check
        _
      $region10: #{tpu_custom_call.1} parent=5 // pred_check_branch
        %127 = sbr.rel (%p124) target = $region12
      $region11: #{tpu_custom_call.1} parent=5 // pred_region
        %s128 = ssub.s32 %s11, 1
        // Predicated region
        $region13: #{tpu_custom_call.1} parent=11 // pred_check
          %p129 = pneg %p86
        $region14: #{tpu_custom_call.1} parent=11 // pred_check_branch
          %131 = sbr.rel (%p129) target = $region16
        $region15: #{tpu_custom_call.1} parent=11 // pred_region
          %p132 = scmp.lt.s32.totalorder %s22, 0
          %s133 = scalar_select %p132, %s22, 0
          %p134 = scmp.lt.s32.totalorder %s23, 0
          %s135 = scalar_select %p134, %s23, 0
          %s136 = sadd.s32 %s135, %s133
          %s137 = smul.addr %s136, 8
          %s138 = scalar_lea.vmem %s1, %s137
        $region16: #{tpu_custom_call.1} parent=11 // pred_fallthru
          _
      $region12: #{tpu_custom_call.1} parent=5 // pred_fallthru
        _
      %p139 = scmp.lt.s32.totalorder %s11, 2
      // Predicated region
      $region17: #{tpu_custom_call.1} parent=5 // pred_check
        %p140 = pneg %p139
      $region18: #{tpu_custom_call.1} parent=5 // pred_check_branch
        %142 = sbr.rel (%p140) target = $region20
      $region19: #{tpu_custom_call.1} parent=5 // pred_region
        // Predicated region
        $region21: #{tpu_custom_call.1} parent=19 // pred_check
          %p143 = pneg %p52
        $region22: #{tpu_custom_call.1} parent=19 // pred_check_branch
          %145 = sbr.rel (%p143) target = $region24
        $region23: #{tpu_custom_call.1} parent=19 // pred_region
          %p146 = scmp.lt.s32.totalorder %s18, 1
          %s147 = scalar_select %p146, %s18, 1
          %p148 = scmp.lt.s32.totalorder %s20, 0
          %s149 = scalar_select %p148, %s20, 0
          %s150 = smul.addr %s149, 4
          %s151 = smul.addr %s147, 4
          %s152 = sadd.s32 %s150, %s151
          %s153 = smul.addr %s152, 4
          %s154 = scalar_lea.vmem %s0, %s153
        $region24: #{tpu_custom_call.1} parent=19 // pred_fallthru
          _
      $region20: #{tpu_custom_call.1} parent=5 // pred_fallthru
        _
      %p155 = scmp.le.s32.totalorder 1, %s11
      %p156 = scmp.lt.s32.totalorder %s11, 3
      %p157 = pnand %p155, %p156
      %p158 = pneg %p157
      // Predicated region
      $region25: #{tpu_custom_call.1} parent=5 // pred_check
        _
      $region26: #{tpu_custom_call.1} parent=5 // pred_check_branch
        %160 = sbr.rel (%p157) target = $region28
      $region27: #{tpu_custom_call.1} parent=5 // pred_region
        %s161 = ssub.s32 %s11, 1
        %p162 = scmp.lt.s32.totalorder %s21, 1
        %s163 = scalar_select %p162, %s21, 1
        %p164 = scmp.lt.s32.totalorder %s23, 0
        %s165 = scalar_select %p164, %s23, 0
        %s166 = smul.addr %s165, 4
        %s167 = smul.addr %s163, 4
        %s168 = sadd.s32 %s166, %s167
        %s169 = smul.addr %s168, 4
        %s170 = scalar_lea.vmem %s0, %s169
        %p171 = pneg %p58
        %p172 = pneg %p55
        %p173 = scmp.lt.s32.totalorder %s22, 0
        %s174 = scalar_select %p173, %s22, 0
        %p175 = scmp.lt.s32.totalorder %s23, 0
        %s176 = scalar_select %p175, %s23, 0
        %s177 = sadd.s32 %s176, %s174
        %s178 = smul.addr %s177, 8
        %s179 = scalar_lea.vmem %s1, %s178
        %p180 = pneg %p86
        %p181 = pneg %p83
        %p182 = pneg %p114
        %p183 = pneg %p111
        %s184 = sand.u32 %s101, 1
        %s185 = scalar_lea.sflag [#allocation4], %s184
        %s186 = sand.u32 %s101, 1
        %s187 = smul.addr %s186, 24
        %s188 = scalar_lea.vmem [#allocation3], %s187
        %p189 = scmp.lt.s32.totalorder %s21, 1
        %s190 = scalar_select %p189, %s21, 1
        %p191 = scmp.lt.s32.totalorder %s23, 0
        %s192 = scalar_select %p191, %s23, 0
        %s193 = smul.addr %s192, 4
        %s194 = smul.addr %s190, 4
        %s195 = sadd.s32 %s193, %s194
        %s196 = smul.addr %s195, 4
        %s197 = scalar_lea.vmem %s0, %s196
        %p198 = scmp.lt.s32.totalorder %s22, 0
        %s199 = scalar_select %p198, %s22, 0
        %p200 = scmp.lt.s32.totalorder %s23, 0
        %s201 = scalar_select %p200, %s23, 0
        %s202 = sadd.s32 %s201, %s199
        %s203 = smul.addr %s202, 8
        %s204 = scalar_lea.vmem %s1, %s203
        %p205 = scmp.eq.s32.totalorder %s23, 0
        // Predicated region
        $region29: #{tpu_custom_call.1} parent=27 // pred_check
          %p206 = pneg %p205
        $region30: #{tpu_custom_call.1} parent=27 // pred_check_branch
          %208 = sbr.rel (%p206) target = $region32
        $region31: #{tpu_custom_call.1} parent=27 // pred_region
          %209 = vst [vmem:[#allocation2] sm:$0xff] 0.0
          %210 = vst [vmem:[#allocation2 + $0x8] sm:$0xff] 0.0
          %vm211 = vcmask 523264
          %212 = vst.msk [vmem:[#allocation2 + $0x10] sm:$0xff] %vm211, 0.0
        $region32: #{tpu_custom_call.1} parent=27 // pred_fallthru
          _
        %v213 = vld [vmem:[%s197] sm:$0xff]
        %v214 = vld [vmem:[%s197 + $0x8] sm:$0xf]
        %217 = vrot.lane.b32.xlu0 %v213, 107
        %v218 = vpop.permute.xlu0 %217
        %219 = vrot.lane.b32.xlu0 %v214, 107
        %v220 = vpop.permute.xlu0 %219
        %v221 = vrot.slane %v218, 4
        %v222 = vrot.slane %v220, 4
        %vm223 = vcmask 1043456
        %v224 = vsel %vm223, %v221, %v222
        %vm225 = vcmask 875520
        %v226 = vsel %vm225, %v218, %v224
        %v229 = vsub.f32 %v213, %v226
        %v230 = vsub.f32 %v214, %v220
        %v231 = vld [vmem:[#allocation2] sm:$0xff]
        %v232 = vld [vmem:[#allocation2 + $0x8] sm:$0xff]
        %v233 = vld [vmem:[#allocation2 + $0x10] sm:$0xff]
        %v234 = vld [vmem:[%s204] sm:$0xff]
        %237 = vst [vmem:[#allocation1] ss:$2 sm:$0xff] %v229
        %s238 = scalar_lea.vmem [#allocation1], 16
        %239 = vst [vmem:[%s238] ss:$2 sm:$0xff] %v230
        %v240 = vld.sshfl [vmem:[#allocation1] sm:$0xff pattern:$0x75316420]
        %v241 = vld.sshfl [vmem:[#allocation1 + $0x8] sm:$0xff pattern:$0x75316420]
        %v242 = vld.sshfl [vmem:[#allocation1 + $0x10] sm:$0xff pattern:$0x75316420]
        %vm243 = vcmask 31744
        %v245 = vsel %vm243, %v234, 0
        %v247 = vsel %vm223, %v240, 0
        %v249 = vsel %vm223, %v241, 0
        %v251 = vsel %vm223, %v242, 0
        %253 = vmatpush.msra.mxu0 0.0
        %254 = vmatpush.msra.mxu0 0.0
        %255 = vmatpush.msra.mxu0 0.0
        %256 = vmatpush.msra.mxu0 0.0
        %257 = vmatpush.msra.mxu0 0.0
        %258 = vmatpush.msra.mxu0 0.0
        %259 = vmatpush.msra.mxu0 0.0
        %260 = vmatpush.msra.mxu0 0.0
        %261 = vmatpush.msra.mxu0 0.0
        %262 = vmatpush.msra.mxu0 0.0
        %263 = vmatpush.msra.mxu0 0.0
        %264 = vmatpush.msra.mxu0 0.0
        %265 = vmatpush.msra.mxu0 0.0
        %266 = vmatpush.msra.mxu0 0.0
        %267 = vmatpush.msra.mxu0 0.0
        %268 = vmatpush.msra.mxu0 %v247
        %269 = vmatmul.f32.gmra.mxu0 %v245
        %v270 = vpop.f32.mrf.mxu0
        %v271 = vadd.f32 0.0, %v270
        %272 = vdwg.mxu0
        %273 = vmatpush.msra.mxu0 0.0
        %274 = vmatpush.msra.mxu0 0.0
        %275 = vmatpush.msra.mxu0 0.0
        %276 = vmatpush.msra.mxu0 0.0
        %277 = vmatpush.msra.mxu0 0.0
        %278 = vmatpush.msra.mxu0 0.0
        %279 = vmatpush.msra.mxu0 0.0
        %280 = vmatpush.msra.mxu0 0.0
        %281 = vmatpush.msra.mxu0 0.0
        %282 = vmatpush.msra.mxu0 0.0
        %283 = vmatpush.msra.mxu0 0.0
        %284 = vmatpush.msra.mxu0 0.0
        %285 = vmatpush.msra.mxu0 0.0
        %286 = vmatpush.msra.mxu0 0.0
        %287 = vmatpush.msra.mxu0 0.0
        %288 = vmatpush.msra.mxu0 %v249
        %289 = vmatmul.f32.gmra.mxu0 %v245
        %v290 = vpop.f32.mrf.mxu0
        %v291 = vadd.f32 0.0, %v290
        %292 = vdwg.mxu0
        %293 = vmatpush.msra.mxu0 0.0
        %294 = vmatpush.msra.mxu0 0.0
        %295 = vmatpush.msra.mxu0 0.0
        %296 = vmatpush.msra.mxu0 0.0
        %297 = vmatpush.msra.mxu0 0.0
        %298 = vmatpush.msra.mxu0 0.0
        %299 = vmatpush.msra.mxu0 0.0
        %300 = vmatpush.msra.mxu0 0.0
        %301 = vmatpush.msra.mxu0 0.0
        %302 = vmatpush.msra.mxu0 0.0
        %303 = vmatpush.msra.mxu0 0.0
        %304 = vmatpush.msra.mxu0 0.0
        %305 = vmatpush.msra.mxu0 0.0
        %306 = vmatpush.msra.mxu0 0.0
        %307 = vmatpush.msra.mxu0 0.0
        %308 = vmatpush.msra.mxu0 %v251
        %309 = vmatmul.f32.gmra.mxu0 %v245
        %v310 = vpop.f32.mrf.mxu0
        %v311 = vadd.f32 0.0, %v310
        %312 = vdwg.mxu0
        %v313 = vadd.f32 %v231, %v271
        %v314 = vadd.f32 %v232, %v291
        %v315 = vadd.f32 %v233, %v311
        %316 = vst [vmem:[#allocation2] sm:$0xff] %v313
        %317 = vst [vmem:[#allocation2 + $0x8] sm:$0xff] %v314
        %vm318 = vcmask 523264
        %319 = vst.msk [vmem:[#allocation2 + $0x10] sm:$0xff] %vm318, %v315
        %v320 = vld [vmem:[%s197] sm:$0xff]
        %v321 = vld [vmem:[%s197 + $0x8] sm:$0xf]
        %324 = vrot.lane.b32.xlu0 %v320, 108
        %v325 = vpop.permute.xlu0 %324
        %326 = vrot.lane.b32.xlu0 %v321, 108
        %v327 = vpop.permute.xlu0 %326
        %v328 = vrot.slane %v325, 4
        %v329 = vrot.slane %v327, 4
        %v330 = vsel %vm223, %v328, %v329
        %vm331 = vcmask 883712
        %v332 = vsel %vm331, %v325, %v330
        %v335 = vsub.f32 %v320, %v332
        %v336 = vsub.f32 %v321, %v327
        %v337 = vld [vmem:[#allocation2] sm:$0xff]
        %v338 = vld [vmem:[#allocation2 + $0x8] sm:$0xff]
        %v339 = vld [vmem:[#allocation2 + $0x10] sm:$0xff]
        %s340 = scalar_lea.vmem %s204, 8
        %v341 = vld [vmem:[%s340] sm:$0xff]
        %344 = vst [vmem:[#allocation1] ss:$2 sm:$0xff] %v335
        %s345 = scalar_lea.vmem [#allocation1], 16
        %346 = vst [vmem:[%s345] ss:$2 sm:$0xff] %v336
        %v347 = vld.sshfl [vmem:[#allocation1] sm:$0xff pattern:$0x75316420]
        %v348 = vld.sshfl [vmem:[#allocation1 + $0x8] sm:$0xff pattern:$0x75316420]
        %v349 = vld.sshfl [vmem:[#allocation1 + $0x10] sm:$0xff pattern:$0x75316420]
        %350 = vrot.lane.b32.xlu0 %v347, 126
        %v351 = vpop.permute.xlu0 %350
        %352 = vrot.lane.b32.xlu0 %v348, 126
        %v353 = vpop.permute.xlu0 %352
        %354 = vrot.lane.b32.xlu0 %v349, 126
        %v355 = vpop.permute.xlu0 %354
        %vm356 = vcmask 1031168
        %v357 = vsel %vm356, %v351, %v353
        %v358 = vsel %vm356, %v353, %v355
        %v360 = vsel %vm243, %v341, 0
        %v362 = vsel %vm223, %v357, 0
        %v364 = vsel %vm223, %v358, 0
        %v366 = vsel %vm223, %v355, 0
        %368 = vmatpush.msra.mxu0 0.0
        %369 = vmatpush.msra.mxu0 0.0
        %370 = vmatpush.msra.mxu0 0.0
        %371 = vmatpush.msra.mxu0 0.0
        %372 = vmatpush.msra.mxu0 0.0
        %373 = vmatpush.msra.mxu0 0.0
        %374 = vmatpush.msra.mxu0 0.0
        %375 = vmatpush.msra.mxu0 0.0
        %376 = vmatpush.msra.mxu0 0.0
        %377 = vmatpush.msra.mxu0 0.0
        %378 = vmatpush.msra.mxu0 0.0
        %379 = vmatpush.msra.mxu0 0.0
        %380 = vmatpush.msra.mxu0 0.0
        %381 = vmatpush.msra.mxu0 0.0
        %382 = vmatpush.msra.mxu0 0.0
        %383 = vmatpush.msra.mxu0 %v362
        %384 = vmatmul.f32.gmra.mxu0 %v360
        %v385 = vpop.f32.mrf.mxu0
        %v386 = vadd.f32 0.0, %v385
        %387 = vdwg.mxu0
        %388 = vmatpush.msra.mxu0 0.0
        %389 = vmatpush.msra.mxu0 0.0
        %390 = vmatpush.msra.mxu0 0.0
        %391 = vmatpush.msra.mxu0 0.0
        %392 = vmatpush.msra.mxu0 0.0
        %393 = vmatpush.msra.mxu0 0.0
        %394 = vmatpush.msra.mxu0 0.0
        %395 = vmatpush.msra.mxu0 0.0
        %396 = vmatpush.msra.mxu0 0.0
        %397 = vmatpush.msra.mxu0 0.0
        %398 = vmatpush.msra.mxu0 0.0
        %399 = vmatpush.msra.mxu0 0.0
        %400 = vmatpush.msra.mxu0 0.0
        %401 = vmatpush.msra.mxu0 0.0
        %402 = vmatpush.msra.mxu0 0.0
        %403 = vmatpush.msra.mxu0 %v364
        %404 = vmatmul.f32.gmra.mxu0 %v360
        %v405 = vpop.f32.mrf.mxu0
        %v406 = vadd.f32 0.0, %v405
        %407 = vdwg.mxu0
        %408 = vmatpush.msra.mxu0 0.0
        %409 = vmatpush.msra.mxu0 0.0
        %410 = vmatpush.msra.mxu0 0.0
        %411 = vmatpush.msra.mxu0 0.0
        %412 = vmatpush.msra.mxu0 0.0
        %413 = vmatpush.msra.mxu0 0.0
        %414 = vmatpush.msra.mxu0 0.0
        %415 = vmatpush.msra.mxu0 0.0
        %416 = vmatpush.msra.mxu0 0.0
        %417 = vmatpush.msra.mxu0 0.0
        %418 = vmatpush.msra.mxu0 0.0
        %419 = vmatpush.msra.mxu0 0.0
        %420 = vmatpush.msra.mxu0 0.0
        %421 = vmatpush.msra.mxu0 0.0
        %422 = vmatpush.msra.mxu0 0.0
        %423 = vmatpush.msra.mxu0 %v366
        %424 = vmatmul.f32.gmra.mxu0 %v360
        %v425 = vpop.f32.mrf.mxu0
        %v426 = vadd.f32 0.0, %v425
        %427 = vdwg.mxu0
        %v428 = vadd.f32 %v337, %v386
        %v429 = vadd.f32 %v338, %v406
        %v430 = vadd.f32 %v339, %v426
        %431 = vst [vmem:[#allocation2] sm:$0xff] %v428
        %432 = vst [vmem:[#allocation2 + $0x8] sm:$0xff] %v429
        %433 = vst.msk [vmem:[#allocation2 + $0x10] sm:$0xff] %vm318, %v430
        %v434 = vld [vmem:[%s197] sm:$0xff]
        %v435 = vld [vmem:[%s197 + $0x8] sm:$0xf]
        %438 = vrot.lane.b32.xlu0 %v434, 109
        %v439 = vpop.permute.xlu0 %438
        %440 = vrot.lane.b32.xlu0 %v435, 109
        %v441 = vpop.permute.xlu0 %440
        %v442 = vrot.slane %v439, 4
        %v443 = vrot.slane %v441, 4
        %v444 = vsel %vm223, %v442, %v443
        %vm445 = vcmask 891904
        %v446 = vsel %vm445, %v439, %v444
        %v449 = vsub.f32 %v434, %v446
        %v450 = vsub.f32 %v435, %v441
        %v451 = vld [vmem:[#allocation2] sm:$0xff]
        %v452 = vld [vmem:[#allocation2 + $0x8] sm:$0xff]
        %v453 = vld [vmem:[#allocation2 + $0x10] sm:$0xff]
        %s454 = scalar_lea.vmem %s204, 16
        %v455 = vld [vmem:[%s454] sm:$0xff]
        %458 = vst [vmem:[#allocation1] ss:$2 sm:$0xff] %v449
        %s459 = scalar_lea.vmem [#allocation1], 16
        %460 = vst [vmem:[%s459] ss:$2 sm:$0xff] %v450
        %v461 = vld.sshfl [vmem:[#allocation1] sm:$0xff pattern:$0x75316420]
        %v462 = vld.sshfl [vmem:[#allocation1 + $0x8] sm:$0xff pattern:$0x75316420]
        %v463 = vld.sshfl [vmem:[#allocation1 + $0x10] sm:$0xff pattern:$0x75316420]
        %464 = vrot.lane.b32.xlu0 %v461, 124
        %v465 = vpop.permute.xlu0 %464
        %466 = vrot.lane.b32.xlu0 %v462, 124
        %v467 = vpop.permute.xlu0 %466
        %468 = vrot.lane.b32.xlu0 %v463, 124
        %v469 = vpop.permute.xlu0 %468
        %vm470 = vcmask 1014784
        %v471 = vsel %vm470, %v465, %v467
        %v472 = vsel %vm470, %v467, %v469
        %v474 = vsel %vm243, %v455, 0
        %v476 = vsel %vm223, %v471, 0
        %v478 = vsel %vm223, %v472, 0
        %v480 = vsel %vm223, %v469, 0
        %482 = vmatpush.msra.mxu0 0.0
        %483 = vmatpush.msra.mxu0 0.0
        %484 = vmatpush.msra.mxu0 0.0
        %485 = vmatpush.msra.mxu0 0.0
        %486 = vmatpush.msra.mxu0 0.0
        %487 = vmatpush.msra.mxu0 0.0
        %488 = vmatpush.msra.mxu0 0.0
        %489 = vmatpush.msra.mxu0 0.0
        %490 = vmatpush.msra.mxu0 0.0
        %491 = vmatpush.msra.mxu0 0.0
        %492 = vmatpush.msra.mxu0 0.0
        %493 = vmatpush.msra.mxu0 0.0
        %494 = vmatpush.msra.mxu0 0.0
        %495 = vmatpush.msra.mxu0 0.0
        %496 = vmatpush.msra.mxu0 0.0
        %497 = vmatpush.msra.mxu0 %v476
        %498 = vmatmul.f32.gmra.mxu0 %v474
        %v499 = vpop.f32.mrf.mxu0
        %v500 = vadd.f32 0.0, %v499
        %501 = vdwg.mxu0
        %502 = vmatpush.msra.mxu0 0.0
        %503 = vmatpush.msra.mxu0 0.0
        %504 = vmatpush.msra.mxu0 0.0
        %505 = vmatpush.msra.mxu0 0.0
        %506 = vmatpush.msra.mxu0 0.0
        %507 = vmatpush.msra.mxu0 0.0
        %508 = vmatpush.msra.mxu0 0.0
        %509 = vmatpush.msra.mxu0 0.0
        %510 = vmatpush.msra.mxu0 0.0
        %511 = vmatpush.msra.mxu0 0.0
        %512 = vmatpush.msra.mxu0 0.0
        %513 = vmatpush.msra.mxu0 0.0
        %514 = vmatpush.msra.mxu0 0.0
        %515 = vmatpush.msra.mxu0 0.0
        %516 = vmatpush.msra.mxu0 0.0
        %517 = vmatpush.msra.mxu0 %v478
        %518 = vmatmul.f32.gmra.mxu0 %v474
        %v519 = vpop.f32.mrf.mxu0
        %v520 = vadd.f32 0.0, %v519
        %521 = vdwg.mxu0
        %522 = vmatpush.msra.mxu0 0.0
        %523 = vmatpush.msra.mxu0 0.0
        %524 = vmatpush.msra.mxu0 0.0
        %525 = vmatpush.msra.mxu0 0.0
        %526 = vmatpush.msra.mxu0 0.0
        %527 = vmatpush.msra.mxu0 0.0
        %528 = vmatpush.msra.mxu0 0.0
        %529 = vmatpush.msra.mxu0 0.0
        %530 = vmatpush.msra.mxu0 0.0
        %531 = vmatpush.msra.mxu0 0.0
        %532 = vmatpush.msra.mxu0 0.0
        %533 = vmatpush.msra.mxu0 0.0
        %534 = vmatpush.msra.mxu0 0.0
        %535 = vmatpush.msra.mxu0 0.0
        %536 = vmatpush.msra.mxu0 0.0
        %537 = vmatpush.msra.mxu0 %v480
        %538 = vmatmul.f32.gmra.mxu0 %v474
        %v539 = vpop.f32.mrf.mxu0
        %v540 = vadd.f32 0.0, %v539
        %541 = vdwg.mxu0
        %v542 = vadd.f32 %v451, %v500
        %v543 = vadd.f32 %v452, %v520
        %v544 = vadd.f32 %v453, %v540
        %545 = vst [vmem:[#allocation2] sm:$0xff] %v542
        %546 = vst [vmem:[#allocation2 + $0x8] sm:$0xff] %v543
        %547 = vst.msk [vmem:[#allocation2 + $0x10] sm:$0xff] %vm318, %v544
        %v548 = vld [vmem:[%s197] sm:$0xff]
        %v549 = vld [vmem:[%s197 + $0x8] sm:$0xf]
        %552 = vrot.lane.b32.xlu0 %v548, 127
        %v553 = vpop.permute.xlu0 %552
        %554 = vrot.lane.b32.xlu0 %v549, 127
        %v555 = vpop.permute.xlu0 %554
        %v556 = vrot.slane %v553, 4
        %v557 = vrot.slane %v555, 4
        %v558 = vsel %vm223, %v556, %v557
        %vm559 = vcmask 1039360
        %v560 = vsel %vm559, %v553, %v558
        %v563 = vsub.f32 %v548, %v560
        %v564 = vsub.f32 %v549, %v555
        %v565 = vld [vmem:[#allocation2] sm:$0xff]
        %v566 = vld [vmem:[#allocation2 + $0x8] sm:$0xff]
        %v567 = vld [vmem:[#allocation2 + $0x10] sm:$0xff]
        %s568 = scalar_lea.vmem %s204, 24
        %v569 = vld [vmem:[%s568] sm:$0xff]
        %572 = vst [vmem:[#allocation1] ss:$2 sm:$0xff] %v563
        %s573 = scalar_lea.vmem [#allocation1], 16
        %574 = vst [vmem:[%s573] ss:$2 sm:$0xff] %v564
        %v575 = vld.sshfl [vmem:[#allocation1] sm:$0xff pattern:$0x75316420]
        %v576 = vld.sshfl [vmem:[#allocation1 + $0x8] sm:$0xff pattern:$0x75316420]
        %v577 = vld.sshfl [vmem:[#allocation1 + $0x10] sm:$0xff pattern:$0x75316420]
        %578 = vrot.lane.b32.xlu0 %v575, 88
        %v579 = vpop.permute.xlu0 %578
        %580 = vrot.lane.b32.xlu0 %v576, 88
        %v581 = vpop.permute.xlu0 %580
        %582 = vrot.lane.b32.xlu0 %v577, 88
        %v583 = vpop.permute.xlu0 %582
        %vm584 = vcmask 719872
        %v585 = vsel %vm584, %v579, %v581
        %v586 = vsel %vm584, %v581, %v583
        %v588 = vsel %vm243, %v569, 0
        %v590 = vsel %vm223, %v585, 0
        %v592 = vsel %vm223, %v586, 0
        %v594 = vsel %vm223, %v583, 0
        %596 = vmatpush.msra.mxu0 0.0
        %597 = vmatpush.msra.mxu0 0.0
        %598 = vmatpush.msra.mxu0 0.0
        %599 = vmatpush.msra.mxu0 0.0
        %600 = vmatpush.msra.mxu0 0.0
        %601 = vmatpush.msra.mxu0 0.0
        %602 = vmatpush.msra.mxu0 0.0
        %603 = vmatpush.msra.mxu0 0.0
        %604 = vmatpush.msra.mxu0 0.0
        %605 = vmatpush.msra.mxu0 0.0
        %606 = vmatpush.msra.mxu0 0.0
        %607 = vmatpush.msra.mxu0 0.0
        %608 = vmatpush.msra.mxu0 0.0
        %609 = vmatpush.msra.mxu0 0.0
        %610 = vmatpush.msra.mxu0 0.0
        %611 = vmatpush.msra.mxu0 %v590
        %612 = vmatmul.f32.gmra.mxu0 %v588
        %v613 = vpop.f32.mrf.mxu0
        %v614 = vadd.f32 0.0, %v613
        %615 = vdwg.mxu0
        %616 = vmatpush.msra.mxu0 0.0
        %617 = vmatpush.msra.mxu0 0.0
        %618 = vmatpush.msra.mxu0 0.0
        %619 = vmatpush.msra.mxu0 0.0
        %620 = vmatpush.msra.mxu0 0.0
        %621 = vmatpush.msra.mxu0 0.0
        %622 = vmatpush.msra.mxu0 0.0
        %623 = vmatpush.msra.mxu0 0.0
        %624 = vmatpush.msra.mxu0 0.0
        %625 = vmatpush.msra.mxu0 0.0
        %626 = vmatpush.msra.mxu0 0.0
        %627 = vmatpush.msra.mxu0 0.0
        %628 = vmatpush.msra.mxu0 0.0
        %629 = vmatpush.msra.mxu0 0.0
        %630 = vmatpush.msra.mxu0 0.0
        %631 = vmatpush.msra.mxu0 %v592
        %632 = vmatmul.f32.gmra.mxu0 %v588
        %v633 = vpop.f32.mrf.mxu0
        %v634 = vadd.f32 0.0, %v633
        %635 = vdwg.mxu0
        %636 = vmatpush.msra.mxu0 0.0
        %637 = vmatpush.msra.mxu0 0.0
        %638 = vmatpush.msra.mxu0 0.0
        %639 = vmatpush.msra.mxu0 0.0
        %640 = vmatpush.msra.mxu0 0.0
        %641 = vmatpush.msra.mxu0 0.0
        %642 = vmatpush.msra.mxu0 0.0
        %643 = vmatpush.msra.mxu0 0.0
        %644 = vmatpush.msra.mxu0 0.0
        %645 = vmatpush.msra.mxu0 0.0
        %646 = vmatpush.msra.mxu0 0.0
        %647 = vmatpush.msra.mxu0 0.0
        %648 = vmatpush.msra.mxu0 0.0
        %649 = vmatpush.msra.mxu0 0.0
        %650 = vmatpush.msra.mxu0 0.0
        %651 = vmatpush.msra.mxu0 %v594
        %652 = vmatmul.f32.gmra.mxu0 %v588
        %v653 = vpop.f32.mrf.mxu0
        %v654 = vadd.f32 0.0, %v653
        %655 = vdwg.mxu0
        %v656 = vadd.f32 %v565, %v614
        %v657 = vadd.f32 %v566, %v634
        %v658 = vadd.f32 %v567, %v654
        %659 = vst [vmem:[#allocation2] sm:$0xff] %v656
        %660 = vst [vmem:[#allocation2 + $0x8] sm:$0xff] %v657
        %661 = vst.msk [vmem:[#allocation2 + $0x10] sm:$0xff] %vm318, %v658
        %v662 = vld [vmem:[%s197] sm:$0xff]
        %v663 = vld [vmem:[%s197 + $0x8] sm:$0xf]
        %666 = vrot.lane.b32.xlu0 %v662, 1
        %v667 = vpop.permute.xlu0 %666
        %668 = vrot.lane.b32.xlu0 %v663, 1
        %v669 = vpop.permute.xlu0 %668
        %v670 = vrot.slane %v667, 4
        %vm671 = vcmask 7168
        %v672 = vsel %vm671, %v670, %v667
        %v673 = vsel %vm671, %v670, %v669
        %v676 = vsub.f32 %v662, %v672
        %v677 = vsub.f32 %v663, %v673
        %v678 = vld [vmem:[#allocation2] sm:$0xff]
        %v679 = vld [vmem:[#allocation2 + $0x8] sm:$0xff]
        %v680 = vld [vmem:[#allocation2 + $0x10] sm:$0xff]
        %s681 = scalar_lea.vmem %s204, 32
        %v682 = vld [vmem:[%s681] sm:$0xff]
        %685 = vst [vmem:[#allocation1] ss:$2 sm:$0xff] %v676
        %s686 = scalar_lea.vmem [#allocation1], 16
        %687 = vst [vmem:[%s686] ss:$2 sm:$0xff] %v677
        %v688 = vld.sshfl [vmem:[#allocation1] sm:$0xff pattern:$0x75316420]
        %v689 = vld.sshfl [vmem:[#allocation1 + $0x8] sm:$0xff pattern:$0x75316420]
        %v690 = vld.sshfl [vmem:[#allocation1 + $0x10] sm:$0xff pattern:$0x75316420]
        %691 = vrot.lane.b32.xlu0 %v688, 84
        %v692 = vpop.permute.xlu0 %691
        %693 = vrot.lane.b32.xlu0 %v689, 84
        %v694 = vpop.permute.xlu0 %693
        %695 = vrot.lane.b32.xlu0 %v690, 84
        %v696 = vpop.permute.xlu0 %695
        %vm697 = vcmask 687104
        %v698 = vsel %vm697, %v692, %v694
        %v699 = vsel %vm697, %v694, %v696
        %v701 = vsel %vm243, %v682, 0
        %v703 = vsel %vm223, %v698, 0
        %v705 = vsel %vm223, %v699, 0
        %v707 = vsel %vm223, %v696, 0
        %709 = vmatpush.msra.mxu0 0.0
        %710 = vmatpush.msra.mxu0 0.0
        %711 = vmatpush.msra.mxu0 0.0
        %712 = vmatpush.msra.mxu0 0.0
        %713 = vmatpush.msra.mxu0 0.0
        %714 = vmatpush.msra.mxu0 0.0
        %715 = vmatpush.msra.mxu0 0.0
        %716 = vmatpush.msra.mxu0 0.0
        %717 = vmatpush.msra.mxu0 0.0
        %718 = vmatpush.msra.mxu0 0.0
        %719 = vmatpush.msra.mxu0 0.0
        %720 = vmatpush.msra.mxu0 0.0
        %721 = vmatpush.msra.mxu0 0.0
        %722 = vmatpush.msra.mxu0 0.0
        %723 = vmatpush.msra.mxu0 0.0
        %724 = vmatpush.msra.mxu0 %v703
        %725 = vmatmul.f32.gmra.mxu0 %v701
        %v726 = vpop.f32.mrf.mxu0
        %v727 = vadd.f32 0.0, %v726
        %728 = vdwg.mxu0
        %729 = vmatpush.msra.mxu0 0.0
        %730 = vmatpush.msra.mxu0 0.0
        %731 = vmatpush.msra.mxu0 0.0
        %732 = vmatpush.msra.mxu0 0.0
        %733 = vmatpush.msra.mxu0 0.0
        %734 = vmatpush.msra.mxu0 0.0
        %735 = vmatpush.msra.mxu0 0.0
        %736 = vmatpush.msra.mxu0 0.0
        %737 = vmatpush.msra.mxu0 0.0
        %738 = vmatpush.msra.mxu0 0.0
        %739 = vmatpush.msra.mxu0 0.0
        %740 = vmatpush.msra.mxu0 0.0
        %741 = vmatpush.msra.mxu0 0.0
        %742 = vmatpush.msra.mxu0 0.0
        %743 = vmatpush.msra.mxu0 0.0
        %744 = vmatpush.msra.mxu0 %v705
        %745 = vmatmul.f32.gmra.mxu0 %v701
        %v746 = vpop.f32.mrf.mxu0
        %v747 = vadd.f32 0.0, %v746
        %748 = vdwg.mxu0
        %749 = vmatpush.msra.mxu0 0.0
        %750 = vmatpush.msra.mxu0 0.0
        %751 = vmatpush.msra.mxu0 0.0
        %752 = vmatpush.msra.mxu0 0.0
        %753 = vmatpush.msra.mxu0 0.0
        %754 = vmatpush.msra.mxu0 0.0
        %755 = vmatpush.msra.mxu0 0.0
        %756 = vmatpush.msra.mxu0 0.0
        %757 = vmatpush.msra.mxu0 0.0
        %758 = vmatpush.msra.mxu0 0.0
        %759 = vmatpush.msra.mxu0 0.0
        %760 = vmatpush.msra.mxu0 0.0
        %761 = vmatpush.msra.mxu0 0.0
        %762 = vmatpush.msra.mxu0 0.0
        %763 = vmatpush.msra.mxu0 0.0
        %764 = vmatpush.msra.mxu0 %v707
        %765 = vmatmul.f32.gmra.mxu0 %v701
        %v766 = vpop.f32.mrf.mxu0
        %v767 = vadd.f32 0.0, %v766
        %768 = vdwg.mxu0
        %v769 = vadd.f32 %v678, %v727
        %v770 = vadd.f32 %v679, %v747
        %v771 = vadd.f32 %v680, %v767
        %772 = vst [vmem:[#allocation2] sm:$0xff] %v769
        %773 = vst [vmem:[#allocation2 + $0x8] sm:$0xff] %v770
        %774 = vst.msk [vmem:[#allocation2 + $0x10] sm:$0xff] %vm318, %v771
        %v775 = vld [vmem:[%s197] sm:$0xff]
        %v776 = vld [vmem:[%s197 + $0x8] sm:$0xff]
        %v777 = vld [vmem:[%s197 + $0x8] sm:$0xf]
        %780 = vrot.lane.b32.xlu0 %v775, 19
        %v781 = vpop.permute.xlu0 %780
        %782 = vrot.lane.b32.xlu0 %v777, 19
        %v783 = vpop.permute.xlu0 %782
        %v784 = vrot.slane %v781, 4
        %v785 = vrot.slane %v783, 4
        %vm786 = vcmask 154624
        %v787 = vsel %vm786, %v784, %v781
        %v788 = vsel %vm223, %v784, %v785
        %v789 = vsel %vm786, %v788, %v783
        %v792 = vsub.f32 %v775, %v787
        %v793 = vsub.f32 %v776, %v789
        %v794 = vld [vmem:[#allocation2] sm:$0xff]
        %v795 = vld [vmem:[#allocation2 + $0x8] sm:$0xff]
        %v796 = vld [vmem:[#allocation2 + $0x10] sm:$0xff]
        %s797 = scalar_lea.vmem %s204, 40
        %v798 = vld [vmem:[%s797] sm:$0xff]
        %801 = vst [vmem:[#allocation1] ss:$2 sm:$0xff] %v792
        %s802 = scalar_lea.vmem [#allocation1], 16
        %803 = vst [vmem:[%s802] ss:$2 sm:$0xff] %v793
        %v804 = vld.sshfl [vmem:[#allocation1] sm:$0xff pattern:$0x75316420]
        %v805 = vld.sshfl [vmem:[#allocation1 + $0x8] sm:$0xff pattern:$0x75316420]
        %v806 = vld.sshfl [vmem:[#allocation1 + $0x10] sm:$0xff pattern:$0x75316420]
        %v807 = vld.sshfl [vmem:[#allocation1 + $0x18] sm:$0xff pattern:$0x75316420]
        %808 = vrot.lane.b32.xlu0 %v804, 48
        %v809 = vpop.permute.xlu0 %808
        %810 = vrot.lane.b32.xlu0 %v805, 48
        %v811 = vpop.permute.xlu0 %810
        %812 = vrot.lane.b32.xlu0 %v806, 48
        %v813 = vpop.permute.xlu0 %812
        %814 = vrot.lane.b32.xlu0 %v807, 48
        %v815 = vpop.permute.xlu0 %814
        %vm816 = vcmask 392192
        %v817 = vsel %vm816, %v809, %v811
        %v818 = vsel %vm816, %v811, %v813
        %v819 = vsel %vm816, %v813, %v815
        %v821 = vsel %vm243, %v798, 0
        %v823 = vsel %vm223, %v817, 0
        %v825 = vsel %vm223, %v818, 0
        %v827 = vsel %vm223, %v819, 0
        %829 = vmatpush.msra.mxu0 0.0
        %830 = vmatpush.msra.mxu0 0.0
        %831 = vmatpush.msra.mxu0 0.0
        %832 = vmatpush.msra.mxu0 0.0
        %833 = vmatpush.msra.mxu0 0.0
        %834 = vmatpush.msra.mxu0 0.0
        %835 = vmatpush.msra.mxu0 0.0
        %836 = vmatpush.msra.mxu0 0.0
        %837 = vmatpush.msra.mxu0 0.0
        %838 = vmatpush.msra.mxu0 0.0
        %839 = vmatpush.msra.mxu0 0.0
        %840 = vmatpush.msra.mxu0 0.0
        %841 = vmatpush.msra.mxu0 0.0
        %842 = vmatpush.msra.mxu0 0.0
        %843 = vmatpush.msra.mxu0 0.0
        %844 = vmatpush.msra.mxu0 %v823
        %845 = vmatmul.f32.gmra.mxu0 %v821
        %v846 = vpop.f32.mrf.mxu0
        %v847 = vadd.f32 0.0, %v846
        %848 = vdwg.mxu0
        %849 = vmatpush.msra.mxu0 0.0
        %850 = vmatpush.msra.mxu0 0.0
        %851 = vmatpush.msra.mxu0 0.0
        %852 = vmatpush.msra.mxu0 0.0
        %853 = vmatpush.msra.mxu0 0.0
        %854 = vmatpush.msra.mxu0 0.0
        %855 = vmatpush.msra.mxu0 0.0
        %856 = vmatpush.msra.mxu0 0.0
        %857 = vmatpush.msra.mxu0 0.0
        %858 = vmatpush.msra.mxu0 0.0
        %859 = vmatpush.msra.mxu0 0.0
        %860 = vmatpush.msra.mxu0 0.0
        %861 = vmatpush.msra.mxu0 0.0
        %862 = vmatpush.msra.mxu0 0.0
        %863 = vmatpush.msra.mxu0 0.0
        %864 = vmatpush.msra.mxu0 %v825
        %865 = vmatmul.f32.gmra.mxu0 %v821
        %v866 = vpop.f32.mrf.mxu0
        %v867 = vadd.f32 0.0, %v866
        %868 = vdwg.mxu0
        %869 = vmatpush.msra.mxu0 0.0
        %870 = vmatpush.msra.mxu0 0.0
        %871 = vmatpush.msra.mxu0 0.0
        %872 = vmatpush.msra.mxu0 0.0
        %873 = vmatpush.msra.mxu0 0.0
        %874 = vmatpush.msra.mxu0 0.0
        %875 = vmatpush.msra.mxu0 0.0
        %876 = vmatpush.msra.mxu0 0.0
        %877 = vmatpush.msra.mxu0 0.0
        %878 = vmatpush.msra.mxu0 0.0
        %879 = vmatpush.msra.mxu0 0.0
        %880 = vmatpush.msra.mxu0 0.0
        %881 = vmatpush.msra.mxu0 0.0
        %882 = vmatpush.msra.mxu0 0.0
        %883 = vmatpush.msra.mxu0 0.0
        %884 = vmatpush.msra.mxu0 %v827
        %885 = vmatmul.f32.gmra.mxu0 %v821
        %v886 = vpop.f32.mrf.mxu0
        %v887 = vadd.f32 0.0, %v886
        %888 = vdwg.mxu0
        %v889 = vadd.f32 %v794, %v847
        %v890 = vadd.f32 %v795, %v867
        %v891 = vadd.f32 %v796, %v887
        %892 = vst [vmem:[#allocation2] sm:$0xff] %v889
        %893 = vst [vmem:[#allocation2 + $0x8] sm:$0xff] %v890
        %894 = vst.msk [vmem:[#allocation2 + $0x10] sm:$0xff] %vm318, %v891
        %v895 = vld [vmem:[%s197] sm:$0xff]
        %v896 = vld [vmem:[%s197 + $0x8] sm:$0xff]
        %v897 = vld [vmem:[%s197 + $0x8] sm:$0xf]
        %900 = vrot.lane.b32.xlu0 %v895, 20
        %v901 = vpop.permute.xlu0 %900
        %902 = vrot.lane.b32.xlu0 %v897, 20
        %v903 = vpop.permute.xlu0 %902
        %v904 = vrot.slane %v901, 4
        %v905 = vrot.slane %v903, 4
        %vm906 = vcmask 162816
        %v907 = vsel %vm906, %v904, %v901
        %v908 = vsel %vm223, %v904, %v905
        %v909 = vsel %vm906, %v908, %v903
        %v912 = vsub.f32 %v895, %v907
        %v913 = vsub.f32 %v896, %v909
        %v914 = vld [vmem:[#allocation2] sm:$0xff]
        %v915 = vld [vmem:[#allocation2 + $0x8] sm:$0xff]
        %v916 = vld [vmem:[#allocation2 + $0x10] sm:$0xff]
        %s917 = scalar_lea.vmem %s204, 48
        %v918 = vld [vmem:[%s917] sm:$0xff]
        %921 = vst [vmem:[#allocation1] ss:$2 sm:$0xff] %v912
        %s922 = scalar_lea.vmem [#allocation1], 16
        %923 = vst [vmem:[%s922] ss:$2 sm:$0xff] %v913
        %v924 = vld.sshfl [vmem:[#allocation1] sm:$0xff pattern:$0x75316420]
        %v925 = vld.sshfl [vmem:[#allocation1 + $0x8] sm:$0xff pattern:$0x75316420]
        %v926 = vld.sshfl [vmem:[#allocation1 + $0x10] sm:$0xff pattern:$0x75316420]
        %v927 = vld.sshfl [vmem:[#allocation1 + $0x18] sm:$0xff pattern:$0x75316420]
        %928 = vrot.lane.b32.xlu0 %v924, 46
        %v929 = vpop.permute.xlu0 %928
        %930 = vrot.lane.b32.xlu0 %v925, 46
        %v931 = vpop.permute.xlu0 %930
        %932 = vrot.lane.b32.xlu0 %v926, 46
        %v933 = vpop.permute.xlu0 %932
        %934 = vrot.lane.b32.xlu0 %v927, 46
        %v935 = vpop.permute.xlu0 %934
        %vm936 = vcmask 375808
        %v937 = vsel %vm936, %v929, %v931
        %v938 = vsel %vm936, %v931, %v933
        %v939 = vsel %vm936, %v933, %v935
        %v941 = vsel %vm243, %v918, 0
        %v943 = vsel %vm223, %v937, 0
        %v945 = vsel %vm223, %v938, 0
        %v947 = vsel %vm223, %v939, 0
        %949 = vmatpush.msra.mxu0 0.0
        %950 = vmatpush.msra.mxu0 0.0
        %951 = vmatpush.msra.mxu0 0.0
        %952 = vmatpush.msra.mxu0 0.0
        %953 = vmatpush.msra.mxu0 0.0
        %954 = vmatpush.msra.mxu0 0.0
        %955 = vmatpush.msra.mxu0 0.0
        %956 = vmatpush.msra.mxu0 0.0
        %957 = vmatpush.msra.mxu0 0.0
        %958 = vmatpush.msra.mxu0 0.0
        %959 = vmatpush.msra.mxu0 0.0
        %960 = vmatpush.msra.mxu0 0.0
        %961 = vmatpush.msra.mxu0 0.0
        %962 = vmatpush.msra.mxu0 0.0
        %963 = vmatpush.msra.mxu0 0.0
        %964 = vmatpush.msra.mxu0 %v943
        %965 = vmatmul.f32.gmra.mxu0 %v941
        %v966 = vpop.f32.mrf.mxu0
        %v967 = vadd.f32 0.0, %v966
        %968 = vdwg.mxu0
        %969 = vmatpush.msra.mxu0 0.0
        %970 = vmatpush.msra.mxu0 0.0
        %971 = vmatpush.msra.mxu0 0.0
        %972 = vmatpush.msra.mxu0 0.0
        %973 = vmatpush.msra.mxu0 0.0
        %974 = vmatpush.msra.mxu0 0.0
        %975 = vmatpush.msra.mxu0 0.0
        %976 = vmatpush.msra.mxu0 0.0
        %977 = vmatpush.msra.mxu0 0.0
        %978 = vmatpush.msra.mxu0 0.0
        %979 = vmatpush.msra.mxu0 0.0
        %980 = vmatpush.msra.mxu0 0.0
        %981 = vmatpush.msra.mxu0 0.0
        %982 = vmatpush.msra.mxu0 0.0
        %983 = vmatpush.msra.mxu0 0.0
        %984 = vmatpush.msra.mxu0 %v945
        %985 = vmatmul.f32.gmra.mxu0 %v941
        %v986 = vpop.f32.mrf.mxu0
        %v987 = vadd.f32 0.0, %v986
        %988 = vdwg.mxu0
        %989 = vmatpush.msra.mxu0 0.0
        %990 = vmatpush.msra.mxu0 0.0
        %991 = vmatpush.msra.mxu0 0.0
        %992 = vmatpush.msra.mxu0 0.0
        %993 = vmatpush.msra.mxu0 0.0
        %994 = vmatpush.msra.mxu0 0.0
        %995 = vmatpush.msra.mxu0 0.0
        %996 = vmatpush.msra.mxu0 0.0
        %997 = vmatpush.msra.mxu0 0.0
        %998 = vmatpush.msra.mxu0 0.0
        %999 = vmatpush.msra.mxu0 0.0
        %1000 = vmatpush.msra.mxu0 0.0
        %1001 = vmatpush.msra.mxu0 0.0
        %1002 = vmatpush.msra.mxu0 0.0
        %1003 = vmatpush.msra.mxu0 0.0
        %1004 = vmatpush.msra.mxu0 %v947
        %1005 = vmatmul.f32.gmra.mxu0 %v941
        %v1006 = vpop.f32.mrf.mxu0
        %v1007 = vadd.f32 0.0, %v1006
        %1008 = vdwg.mxu0
        %v1009 = vadd.f32 %v914, %v967
        %v1010 = vadd.f32 %v915, %v987
        %v1011 = vadd.f32 %v916, %v1007
        %1012 = vst [vmem:[#allocation2] sm:$0xff] %v1009
        %1013 = vst [vmem:[#allocation2 + $0x8] sm:$0xff] %v1010
        %1014 = vst.msk [vmem:[#allocation2 + $0x10] sm:$0xff] %vm318, %v1011
        %v1015 = vld [vmem:[%s197] sm:$0xff]
        %v1016 = vld [vmem:[%s197 + $0x8] sm:$0xff]
        %v1017 = vld [vmem:[%s197 + $0x8] sm:$0xf]
        %1020 = vrot.lane.b32.xlu0 %v1015, 21
        %v1021 = vpop.permute.xlu0 %1020
        %1022 = vrot.lane.b32.xlu0 %v1017, 21
        %v1023 = vpop.permute.xlu0 %1022
        %v1024 = vrot.slane %v1021, 4
        %v1025 = vrot.slane %v1023, 4
        %vm1026 = vcmask 171008
        %v1027 = vsel %vm1026, %v1024, %v1021
        %v1028 = vsel %vm223, %v1024, %v1025
        %v1029 = vsel %vm1026, %v1028, %v1023
        %v1032 = vsub.f32 %v1015, %v1027
        %v1033 = vsub.f32 %v1016, %v1029
        %v1034 = vld [vmem:[#allocation2] sm:$0xff]
        %v1035 = vld [vmem:[#allocation2 + $0x8] sm:$0xff]
        %v1036 = vld [vmem:[#allocation2 + $0x10] sm:$0xff]
        %s1037 = scalar_lea.vmem %s204, 56
        %v1038 = vld [vmem:[%s1037] sm:$0xff]
        %1041 = vst [vmem:[#allocation1] ss:$2 sm:$0xff] %v1032
        %s1042 = scalar_lea.vmem [#allocation1], 16
        %1043 = vst [vmem:[%s1042] ss:$2 sm:$0xff] %v1033
        %v1044 = vld.sshfl [vmem:[#allocation1] sm:$0xff pattern:$0x75316420]
        %v1045 = vld.sshfl [vmem:[#allocation1 + $0x8] sm:$0xff pattern:$0x75316420]
        %v1046 = vld.sshfl [vmem:[#allocation1 + $0x10] sm:$0xff pattern:$0x75316420]
        %v1047 = vld.sshfl [vmem:[#allocation1 + $0x18] sm:$0xff pattern:$0x75316420]
        %1048 = vrot.lane.b32.xlu0 %v1044, 44
        %v1049 = vpop.permute.xlu0 %1048
        %1050 = vrot.lane.b32.xlu0 %v1045, 44
        %v1051 = vpop.permute.xlu0 %1050
        %1052 = vrot.lane.b32.xlu0 %v1046, 44
        %v1053 = vpop.permute.xlu0 %1052
        %1054 = vrot.lane.b32.xlu0 %v1047, 44
        %v1055 = vpop.permute.xlu0 %1054
        %vm1056 = vcmask 359424
        %v1057 = vsel %vm1056, %v1049, %v1051
        %v1058 = vsel %vm1056, %v1051, %v1053
        %v1059 = vsel %vm1056, %v1053, %v1055
        %v1061 = vsel %vm243, %v1038, 0
        %v1063 = vsel %vm223, %v1057, 0
        %v1065 = vsel %vm223, %v1058, 0
        %v1067 = vsel %vm223, %v1059, 0
        %1069 = vmatpush.msra.mxu0 0.0
        %1070 = vmatpush.msra.mxu0 0.0
        %1071 = vmatpush.msra.mxu0 0.0
        %1072 = vmatpush.msra.mxu0 0.0
        %1073 = vmatpush.msra.mxu0 0.0
        %1074 = vmatpush.msra.mxu0 0.0
        %1075 = vmatpush.msra.mxu0 0.0
        %1076 = vmatpush.msra.mxu0 0.0
        %1077 = vmatpush.msra.mxu0 0.0
        %1078 = vmatpush.msra.mxu0 0.0
        %1079 = vmatpush.msra.mxu0 0.0
        %1080 = vmatpush.msra.mxu0 0.0
        %1081 = vmatpush.msra.mxu0 0.0
        %1082 = vmatpush.msra.mxu0 0.0
        %1083 = vmatpush.msra.mxu0 0.0
        %1084 = vmatpush.msra.mxu0 %v1063
        %1085 = vmatmul.f32.gmra.mxu0 %v1061
        %v1086 = vpop.f32.mrf.mxu0
        %v1087 = vadd.f32 0.0, %v1086
        %1088 = vdwg.mxu0
        %1089 = vmatpush.msra.mxu0 0.0
        %1090 = vmatpush.msra.mxu0 0.0
        %1091 = vmatpush.msra.mxu0 0.0
        %1092 = vmatpush.msra.mxu0 0.0
        %1093 = vmatpush.msra.mxu0 0.0
        %1094 = vmatpush.msra.mxu0 0.0
        %1095 = vmatpush.msra.mxu0 0.0
        %1096 = vmatpush.msra.mxu0 0.0
        %1097 = vmatpush.msra.mxu0 0.0
        %1098 = vmatpush.msra.mxu0 0.0
        %1099 = vmatpush.msra.mxu0 0.0
        %1100 = vmatpush.msra.mxu0 0.0
        %1101 = vmatpush.msra.mxu0 0.0
        %1102 = vmatpush.msra.mxu0 0.0
        %1103 = vmatpush.msra.mxu0 0.0
        %1104 = vmatpush.msra.mxu0 %v1065
        %1105 = vmatmul.f32.gmra.mxu0 %v1061
        %v1106 = vpop.f32.mrf.mxu0
        %v1107 = vadd.f32 0.0, %v1106
        %1108 = vdwg.mxu0
        %1109 = vmatpush.msra.mxu0 0.0
        %1110 = vmatpush.msra.mxu0 0.0
        %1111 = vmatpush.msra.mxu0 0.0
        %1112 = vmatpush.msra.mxu0 0.0
        %1113 = vmatpush.msra.mxu0 0.0
        %1114 = vmatpush.msra.mxu0 0.0
        %1115 = vmatpush.msra.mxu0 0.0
        %1116 = vmatpush.msra.mxu0 0.0
        %1117 = vmatpush.msra.mxu0 0.0
        %1118 = vmatpush.msra.mxu0 0.0
        %1119 = vmatpush.msra.mxu0 0.0
        %1120 = vmatpush.msra.mxu0 0.0
        %1121 = vmatpush.msra.mxu0 0.0
        %1122 = vmatpush.msra.mxu0 0.0
        %1123 = vmatpush.msra.mxu0 0.0
        %1124 = vmatpush.msra.mxu0 %v1067
        %1125 = vmatmul.f32.gmra.mxu0 %v1061
        %v1126 = vpop.f32.mrf.mxu0
        %v1127 = vadd.f32 0.0, %v1126
        %1128 = vdwg.mxu0
        %v1129 = vadd.f32 %v1034, %v1087
        %v1130 = vadd.f32 %v1035, %v1107
        %v1131 = vadd.f32 %v1036, %v1127
        %1132 = vst [vmem:[#allocation2] sm:$0xff] %v1129
        %1133 = vst [vmem:[#allocation2 + $0x8] sm:$0xff] %v1130
        %1134 = vst.msk [vmem:[#allocation2 + $0x10] sm:$0xff] %vm318, %v1131
        // Predicated region
        $region33: #{tpu_custom_call.1} parent=27 // pred_check
          %p1135 = pneg %p205
        $region34: #{tpu_custom_call.1} parent=27 // pred_check_branch
          %1137 = sbr.rel (%p1135) target = $region36
        $region35: #{tpu_custom_call.1} parent=27 // pred_region
          %v1138 = vld [vmem:[#allocation2] sm:$0xff]
          %v1139 = vld [vmem:[#allocation2 + $0x8] sm:$0xff]
          %v1140 = vld [vmem:[#allocation2 + $0x10] sm:$0xff]
          %1141 = vst [vmem:[%s188] sm:$0xff] %v1138
          %1142 = vst [vmem:[%s188 + $0x8] sm:$0xff] %v1139
          %1143 = vst.msk [vmem:[%s188 + $0x10] sm:$0xff] %vm318, %v1140
        $region36: #{tpu_custom_call.1} parent=27 // pred_fallthru
          _
        %s1144 = sand.u32 %s101, 1
        %s1145 = scalar_lea.sflag [#allocation4], %s1144
        %s1146 = sand.u32 %s101, 1
        %s1147 = smul.addr %s1146, 24
        %s1148 = scalar_lea.vmem [#allocation3], %s1147
        // Predicated region
        $region37: #{tpu_custom_call.1} parent=27 // pred_check
          %p1149 = pneg %p111
        $region38: #{tpu_custom_call.1} parent=27 // pred_check_branch
          %1151 = sbr.rel (%p1149) target = $region40
        $region39: #{tpu_custom_call.1} parent=27 // pred_region
          %1153 = vsyncadd %s1145, 0
          %s1154 = smul.addr %s22, 3
          %s1155 = smul.addr %s21, 3
          %s1156 = sadd.s32 %s1154, %s1155
          %s1157 = smul.addr %s1156, 8
          %s1158 = scalar_lea.hbm %s2, %s1157
          %s1160 = sshll.u32 %s1148, 4
          %s1161 = int_to_ptr.vmem [resolvable:$true] %s1160
          %s1162 = sshll.u32 %s1158, 4
          %s1163 = int_to_ptr.hbm [resolvable:$true] %s1162
          %1165 = dma.vmem_to_hbm [thread:$0]  %s1161, 384, %s1163, %s1145
        $region40: #{tpu_custom_call.1} parent=27 // pred_fallthru
          _
      $region28: #{tpu_custom_call.1} parent=5 // pred_fallthru
        _
      %p1166 = scmp.le.s32.totalorder 2, %s11
      // Predicated region
      $region41: #{tpu_custom_call.1} parent=5 // pred_check
        %p1167 = pneg %p1166
      $region42: #{tpu_custom_call.1} parent=5 // pred_check_branch
        %1169 = sbr.rel (%p1167) target = $region44
      $region43: #{tpu_custom_call.1} parent=5 // pred_region
        %s1170 = ssub.s32 %s11, 2
        // Predicated region
        $region45: #{tpu_custom_call.1} parent=43 // pred_check
          %p1171 = pneg %p117
        $region46: #{tpu_custom_call.1} parent=43 // pred_check_branch
          %1173 = sbr.rel (%p1171) target = $region48
        $region47: #{tpu_custom_call.1} parent=43 // pred_region
          %s1174 = sand.u32 %s102, 1
          %s1175 = scalar_lea.sflag [#allocation4], %s1174
          %s1176 = sand.u32 %s102, 1
          %s1177 = smul.addr %s1176, 24
          %s1178 = scalar_lea.vmem [#allocation3], %s1177
          %1180 = dma.done %s1175, 384
        $region48: #{tpu_custom_call.1} parent=43 // pred_fallthru
          _
      $region44: #{tpu_custom_call.1} parent=5 // pred_fallthru
        _
    $region6: #{tpu_custom_call.1} parent=1 // loop_footer
      %s15 = sadd.s32 1, %s11
    $region7: #{tpu_custom_call.1} parent=1 // loop_footer_branch
      %10 = sbr.rel target = $region3
    $region8: #{tpu_custom_call.1} parent=1 // loop_exit
      _
    %1181 = vsyncpa [#allocation4], 1
    %s1182 = scalar_lea.sflag [#allocation4], 1
    %1183 = vsyncpa %s1182, 1

</llo_original>
